<compile_context>
chip_gen: v5e
topology: v5e:2x2
jax: 0.10.0
libtpu: 0.0.40
codegen_flags: <defaults>
</compile_context>

<pallas_src>
import jax
import jax.numpy as jnp
from jax.experimental import pallas as pl
from jax.experimental.pallas import tpu as pltpu


# ----------------------------------------------------------------------------
# Kernel 1: hoisted input projection.
#   gates[t*B + b, :] = x[t*B + b, :] @ W_ih^T + (b_ih + b_hh)
# One big row-tiled matmul (MXU-friendly, "parallel" grid axis).
# ----------------------------------------------------------------------------
def gate_proj_kernel(x_ref, w_ref, b_ref, o_ref):
    o_ref[...] = (
        jnp.dot(x_ref[...], w_ref[...], preferred_element_type=jnp.float32)
        + b_ref[...])


def run_gate_proj(x2d, wih_t, b):
    M, E = x2d.shape
    G = wih_t.shape[1]                      # 4 * D
    tm = M if M <= 512 else 256             # row tile (remainder handled by Pallas)
    return pl.pallas_call(
        gate_proj_kernel,
        out_shape=jax.ShapeDtypeStruct((M, G), jnp.float32),
        grid=(pl.cdiv(M, tm),),
        in_specs=[
            pl.BlockSpec((tm, E), lambda i: (i, 0)),   # x rows (bf16)
            pl.BlockSpec((E, G), lambda i: (0, 0)),    # W_ih^T (bf16), loop-invariant
            pl.BlockSpec((1, G), lambda i: (0, 0)),    # combined bias (f32)
        ],
        out_specs=pl.BlockSpec((tm, G), lambda i: (i, 0)),
        compiler_params=pltpu.CompilerParams(
            dimension_semantics=("parallel",)),
    )(x2d, wih_t, b)


# ----------------------------------------------------------------------------
# Kernel 2: fused LSTM recurrence + length masking + last-h capture + attention.
# gates are time-major (N, B, 4D) so every per-step access is a leading-dim index.
# ----------------------------------------------------------------------------
def lstm_attn_kernel(gates_ref, whh_ref, wattn_ref, len_ref,
                     feat_ref, attn_ref,
                     h_ref, c_ref, hlast_ref, r_ref):
    N = gates_ref.shape[0]
    B, D = h_ref.shape

    h_ref[...] = jnp.zeros_like(h_ref)
    c_ref[...] = jnp.zeros_like(c_ref)
    hlast_ref[...] = jnp.zeros_like(hlast_ref)   # len==0 -> zero hidden state

    len_col = len_ref[...]          # (B, 1) int32 sequence lengths
    whh = whh_ref[...]              # (D, 4D) bf16, resident across the whole loop

    def step(t, carry):
        # Only the recurrent half of the projection sits on the serial path.
        g = gates_ref[t] + jnp.dot(
            h_ref[...].astype(whh.dtype), whh,
            preferred_element_type=jnp.float32)               # (B, 4D), order i,f,g,o
        # NOTE: keep D a multiple of 128 at production sizes so these gate slices
        # are lane-aligned (free); at D=32 they are intra-vreg selects.
        i_g = jax.nn.sigmoid(g[:, 0 * D:1 * D])
        f_g = jax.nn.sigmoid(g[:, 1 * D:2 * D])
        g_g = jnp.tanh(g[:, 2 * D:3 * D])
        o_g = jax.nn.sigmoid(g[:, 3 * D:4 * D])
        c = f_g * c_ref[...] + i_g * g_g
        h = o_g * jnp.tanh(c)
        c_ref[...] = c
        h_ref[...] = h
        # pack_padded/pad_packed semantics: zero past-length steps and capture h
        # exactly at t == len-1 (replaces the JAX-level mask + gather + HBM passes).
        valid_t = t < len_col                                  # (B, 1) bool
        r_ref[t] = jnp.where(valid_t, h, 0.0)
        hlast_ref[...] = jnp.where(len_col == t + 1, h, hlast_ref[...])
        return carry

    jax.lax.fori_loop(0, N, step, 0, unroll=(N <= 32))

    # ---- bilinear word attention (diagonal W_attn), entirely in VMEM ----
    R = r_ref[...]                                    # (N, B, D) masked hidden states
    hw = hlast_ref[...] * wattn_ref[...]              # (B, D) = h_last * w_attn
    score = jnp.sum(R * hw[None, :, :], axis=-1).T    # (B, N)
    valid = jax.lax.broadcasted_iota(jnp.int32, (B, N), 1) < len_col   # (B, N)
    score = jnp.where(valid, score, jnp.float32(-1e9))
    m = jnp.max(score, axis=1, keepdims=True)
    e = jnp.exp(score - m)
    a = e * pl.reciprocal(jnp.sum(e, axis=1, keepdims=True), approx=True)  # softmax(T)
    attn_ref[...] = a                                               # (B, N)
    feat_ref[...] = jnp.sum(R * a.T[:, :, None], axis=0)            # (B, D)


def run_lstm_attention(gates_nbg, whh_t, w_attn, len_col):
    N, B, G = gates_nbg.shape
    D = whh_t.shape[0]
    assert G == 4 * D
    return pl.pallas_call(
        lstm_attn_kernel,
        out_shape=(jax.ShapeDtypeStruct((B, D), jnp.float32),
                   jax.ShapeDtypeStruct((B, N), jnp.float32)),
        scratch_shapes=[
            pltpu.VMEM((B, D), jnp.float32),      # h carry
            pltpu.VMEM((B, D), jnp.float32),      # c carry
            pltpu.VMEM((B, D), jnp.float32),      # h at t = len-1
            pltpu.VMEM((N, B, D), jnp.float32),   # masked hidden states R
        ],
    )(gates_nbg, whh_t, w_attn, len_col)


# ----------------------------------------------------------------------------
# Parameters (deterministic synthetic init, shapes match the PyTorch module).
# ----------------------------------------------------------------------------
def init_params(key, text_dim, embedding_dim, vocab_size, padding_idx=0):
    D, E, V = text_dim, embedding_dim, vocab_size
    k1, k2, k3, k4, k5, k6 = jax.random.split(key, 6)
    emb = jax.random.normal(k1, (V, E), jnp.float32)
    emb = emb.at[padding_idx].set(0.0)               # nn.Embedding padding_idx row
    s = 1.0 / jnp.sqrt(jnp.float32(D))
    wih = jax.random.uniform(k2, (4 * D, E), jnp.float32, -s, s)
    whh = jax.random.uniform(k3, (4 * D, D), jnp.float32, -s, s)
    bih = jax.random.uniform(k4, (4 * D,), jnp.float32, -s, s)
    bhh = jax.random.uniform(k5, (4 * D,), jnp.float32, -s, s)
    bound = jnp.sqrt(6.0 / (1.0 + D))                # xavier_uniform on (1, D)
    w_attn = jax.random.uniform(k6, (1, D), jnp.float32, -bound, bound)
    return dict(emb=emb.astype(jnp.bfloat16),        # bf16 table -> half the gather bytes
                wih_t=wih.T.astype(jnp.bfloat16),    # (E, 4D) bf16 for the MXU
                whh_t=whh.T.astype(jnp.bfloat16),    # (D, 4D) bf16 for the MXU
                b=(bih + bhh)[None, :],              # (1, 4D) f32
                w_attn=w_attn)                       # (1, D) f32


# ----------------------------------------------------------------------------
# Full forward pass (mirrors LSTM.forward), fully jittable (no host sync).
# ----------------------------------------------------------------------------
def lstm_forward(params, padded_tokens, padding_idx=0):
    B, N = padded_tokens.shape
    D = params["whh_t"].shape[0]

    # Embedding lookup (XLA gather glue), emitted directly in time-major flat order
    # (row = t*B + b) so no activation transpose is ever materialized.
    tok_flat = padded_tokens.T.reshape(-1)                       # (N*B,) int32
    x2d = params["emb"][tok_flat]                                # (N*B, E) bf16
    # TODO(synk): F.dropout skipped — module reproduced in eval mode (training=False).
    len_seq = jnp.sum(padded_tokens != padding_idx, axis=1).astype(jnp.int32)

    gates2d = run_gate_proj(x2d, params["wih_t"], params["b"])   # (N*B, 4D) f32
    gates = gates2d.reshape(N, B, 4 * D)                         # free metadata reshape

    final_feat, attn = run_lstm_attention(
        gates, params["whh_t"], params["w_attn"], len_seq.reshape(B, 1))
    # attn has static shape (B, N); columns >= len_seq[b] carry exactly-zero weight,
    # so attn[:, :max(len_seq)] matches PyTorch's pad_packed-length output.
    return final_feat, attn


if __name__ == "__main__":
    B, N = 2, 8
    vocab_size, embedding_dim, text_dim = 32, 16, 32

    key = jax.random.PRNGKey(0)
    k_par, k_tok = jax.random.split(key)
    params = init_params(k_par, text_dim, embedding_dim, vocab_size)

    # Tokens with trailing padding (lengths 8 and 5), padding_idx = 0.
    tokens = jax.random.randint(k_tok, (B, N), 1, vocab_size, dtype=jnp.int32)
    tokens = tokens.at[1, 5:].set(0)

    fwd = jax.jit(lstm_forward)
    final_feat, attn = fwd(params, tokens)
    jax.block_until_ready((final_feat, attn))
    assert final_feat.shape == (B, text_dim)
    assert attn.shape == (B, N)
    print("KERNEL_OK")
</pallas_src>

<mosaic_0001>
module attributes {stable_mosaic.version = 11 : i64} {
  func.func @gate_proj_kernel(%arg0: i32, %arg1: memref<16x16xbf16, #tpu.memory_space<vmem>>, %arg2: memref<16x128xbf16, #tpu.memory_space<vmem>>, %arg3: memref<1x128xf32, #tpu.memory_space<vmem>>, %arg4: memref<16x128xf32, #tpu.memory_space<vmem>>) attributes {dimension_semantics = [#tpu.dimension_semantics<parallel>], iteration_bounds = array<i64: 1>, scalar_prefetch = 0 : i64, scratch_operands = 0 : i64, tpu.core_type = #tpu.core_type<tc>, window_params = [{transform_indices = @transform_0, window_bounds = array<i64: 16, 16>}, {pipeline_mode = #tpu.pipeline_mode<synchronous>, transform_indices = @transform_1, window_bounds = array<i64: 16, 128>}, {pipeline_mode = #tpu.pipeline_mode<synchronous>, transform_indices = @transform_2, window_bounds = array<i64: 1, 128>}, {transform_indices = @transform_3, window_bounds = array<i64: 16, 128>}]} {
    %c0 = arith.constant 0 : index
    %c0_0 = arith.constant 0 : index
    %0 = vector.load %arg1[%c0, %c0_0] : memref<16x16xbf16, #tpu.memory_space<vmem>>, vector<16x16xbf16>
    %c0_1 = arith.constant 0 : index
    %c0_2 = arith.constant 0 : index
    %1 = vector.load %arg2[%c0_1, %c0_2] : memref<16x128xbf16, #tpu.memory_space<vmem>>, vector<16x128xbf16>
    %cst = arith.constant dense<0.000000e+00> : vector<16x128xf32>
    %2 = tpu.matmul %0, %1, %cst {dimension_numbers = #tpu.dot_dimension_numbers<[1], [0], [0], [1], [0, 0, 1, 1], [], []>} : vector<16x16xbf16>, vector<16x128xbf16>, vector<16x128xf32> -> vector<16x128xf32>
    %c0_3 = arith.constant 0 : index
    %c0_4 = arith.constant 0 : index
    %3 = vector.load %arg3[%c0_3, %c0_4] : memref<1x128xf32, #tpu.memory_space<vmem>>, vector<1x128xf32>
    %4 = vector.broadcast %3 : vector<1x128xf32> to vector<16x128xf32>
    %5 = arith.addf %2, %4 : vector<16x128xf32>
    %c0_5 = arith.constant 0 : index
    %c0_6 = arith.constant 0 : index
    %6 = vector.load %arg4[%c0_5, %c0_6] : memref<16x128xf32, #tpu.memory_space<vmem>>, vector<16x128xf32>
    tpu.vector_store %arg4[%c0_5, %c0_6], %5 {strides = array<i32>} : memref<16x128xf32, #tpu.memory_space<vmem>>, vector<16x128xf32>,
    return
  }
  func.func @transform_0(%arg0: i32) -> (i32, i32) {
    %c0_i32 = arith.constant 0 : i32
    %c0_i32_0 = arith.constant 0 : i32
    return %arg0, %c0_i32 : i32, i32
  }
  func.func @transform_1(%arg0: i32) -> (i32, i32) {
    %c0_i32 = arith.constant 0 : i32
    %c0_i32_0 = arith.constant 0 : i32
    %c0_i32_1 = arith.constant 0 : i32
    return %c0_i32, %c0_i32_0 : i32, i32
  }
  func.func @transform_2(%arg0: i32) -> (i32, i32) {
    %c0_i32 = arith.constant 0 : i32
    %c0_i32_0 = arith.constant 0 : i32
    %c0_i32_1 = arith.constant 0 : i32
    return %c0_i32, %c0_i32_0 : i32, i32
  }
  func.func @transform_3(%arg0: i32) -> (i32, i32) {
    %c0_i32 = arith.constant 0 : i32
    %c0_i32_0 = arith.constant 0 : i32
    return %arg0, %c0_i32 : i32, i32
  }
}

module attributes {stable_mosaic.version = 11 : i64} {
  func.func @lstm_attn_kernel(%arg0: memref<8x2x128xf32, #tpu.memory_space<vmem>>, %arg1: memref<32x128xbf16, #tpu.memory_space<vmem>>, %arg2: memref<1x32xf32, #tpu.memory_space<vmem>>, %arg3: memref<2x1xi32, #tpu.memory_space<vmem>>, %arg4: memref<2x32xf32, #tpu.memory_space<vmem>>, %arg5: memref<2x8xf32, #tpu.memory_space<vmem>>, %arg6: memref<2x32xf32, #tpu.memory_space<vmem>>, %arg7: memref<2x32xf32, #tpu.memory_space<vmem>>, %arg8: memref<2x32xf32, #tpu.memory_space<vmem>>, %arg9: memref<8x2x32xf32, #tpu.memory_space<vmem>>) attributes {dimension_semantics = [], scalar_prefetch = 0 : i64, scratch_operands = 4 : i64, tpu.core_type = #tpu.core_type<tc>} {
    %cst = arith.constant 0.000000e+00 : f32
    %0 = vector.broadcast %cst : f32 to vector<2x32xf32>
    %c0 = arith.constant 0 : index
    %c0_0 = arith.constant 0 : index
    %1 = vector.load %arg6[%c0, %c0_0] : memref<2x32xf32, #tpu.memory_space<vmem>>, vector<2x32xf32>
    tpu.vector_store %arg6[%c0, %c0_0], %0 {strides = array<i32>} : memref<2x32xf32, #tpu.memory_space<vmem>>, vector<2x32xf32>,
    %cst_1 = arith.constant 0.000000e+00 : f32
    %2 = vector.broadcast %cst_1 : f32 to vector<2x32xf32>
    %c0_2 = arith.constant 0 : index
    %c0_3 = arith.constant 0 : index
    %3 = vector.load %arg7[%c0_2, %c0_3] : memref<2x32xf32, #tpu.memory_space<vmem>>, vector<2x32xf32>
    tpu.vector_store %arg7[%c0_2, %c0_3], %2 {strides = array<i32>} : memref<2x32xf32, #tpu.memory_space<vmem>>, vector<2x32xf32>,
    %cst_4 = arith.constant 0.000000e+00 : f32
    %4 = vector.broadcast %cst_4 : f32 to vector<2x32xf32>
    %c0_5 = arith.constant 0 : index
    %c0_6 = arith.constant 0 : index
    %5 = vector.load %arg8[%c0_5, %c0_6] : memref<2x32xf32, #tpu.memory_space<vmem>>, vector<2x32xf32>
    tpu.vector_store %arg8[%c0_5, %c0_6], %4 {strides = array<i32>} : memref<2x32xf32, #tpu.memory_space<vmem>>, vector<2x32xf32>,
    %c0_7 = arith.constant 0 : index
    %c0_8 = arith.constant 0 : index
    %6 = vector.load %arg3[%c0_7, %c0_8] : memref<2x1xi32, #tpu.memory_space<vmem>>, vector<2x1xi32>
    %c0_9 = arith.constant 0 : index
    %c0_10 = arith.constant 0 : index
    %7 = vector.load %arg1[%c0_9, %c0_10] : memref<32x128xbf16, #tpu.memory_space<vmem>>, vector<32x128xbf16>
    %c0_i32 = arith.constant 0 : i32
    %8 = arith.index_cast %c0_i32 : i32 to index
    %c0_11 = arith.constant 0 : index
    %c0_12 = arith.constant 0 : index
    %9 = vector.load %arg0[%8, %c0_11, %c0_12] : memref<8x2x128xf32, #tpu.memory_space<vmem>>, vector<1x2x128xf32>
    %10 = vector.shape_cast %9 : vector<1x2x128xf32> to vector<2x128xf32>
    %c0_13 = arith.constant 0 : index
    %c0_14 = arith.constant 0 : index
    %11 = vector.load %arg6[%c0_13, %c0_14] : memref<2x32xf32, #tpu.memory_space<vmem>>, vector<2x32xf32>
    %12 = arith.truncf %11 : vector<2x32xf32> to vector<2x32xbf16>
    %cst_15 = arith.constant dense<0.000000e+00> : vector<2x128xf32>
    %13 = tpu.matmul %12, %7, %cst_15 {dimension_numbers = #tpu.dot_dimension_numbers<[1], [0], [0], [1], [0, 0, 1, 1], [], []>} : vector<2x32xbf16>, vector<32x128xbf16>, vector<2x128xf32> -> vector<2x128xf32>
    %14 = arith.addf %10, %13 : vector<2x128xf32>
    %15 = vector.extract_strided_slice %14 {offsets = [0, 0], sizes = [2, 32], strides = [1, 1]} : vector<2x128xf32> to vector<2x32xf32>
    %16 = arith.negf %15 : vector<2x32xf32>
    %17 = math.exp %16 : vector<2x32xf32>
    %cst_16 = arith.constant 1.000000e+00 : f32
    %18 = vector.broadcast %cst_16 : f32 to vector<2x32xf32>
    %19 = arith.addf %18, %17 : vector<2x32xf32>
    %20 = arith.divf %18, %19 : vector<2x32xf32>
    %21 = vector.extract_strided_slice %14 {offsets = [0, 32], sizes = [2, 32], strides = [1, 1]} : vector<2x128xf32> to vector<2x32xf32>
    %22 = arith.negf %21 : vector<2x32xf32>
    %23 = math.exp %22 : vector<2x32xf32>
    %cst_17 = arith.constant 1.000000e+00 : f32
    %24 = vector.broadcast %cst_17 : f32 to vector<2x32xf32>
    %25 = arith.addf %24, %23 : vector<2x32xf32>
    %26 = arith.divf %24, %25 : vector<2x32xf32>
    %27 = vector.extract_strided_slice %14 {offsets = [0, 64], sizes = [2, 32], strides = [1, 1]} : vector<2x128xf32> to vector<2x32xf32>
    %28 = math.tanh %27 : vector<2x32xf32>
    %29 = vector.extract_strided_slice %14 {offsets = [0, 96], sizes = [2, 32], strides = [1, 1]} : vector<2x128xf32> to vector<2x32xf32>
    %30 = arith.negf %29 : vector<2x32xf32>
    %31 = math.exp %30 : vector<2x32xf32>
    %cst_18 = arith.constant 1.000000e+00 : f32
    %32 = vector.broadcast %cst_18 : f32 to vector<2x32xf32>
    %33 = arith.addf %32, %31 : vector<2x32xf32>
    %34 = arith.divf %32, %33 : vector<2x32xf32>
    %c0_19 = arith.constant 0 : index
    %c0_20 = arith.constant 0 : index
    %35 = vector.load %arg7[%c0_19, %c0_20] : memref<2x32xf32, #tpu.memory_space<vmem>>, vector<2x32xf32>
    %36 = arith.mulf %26, %35 : vector<2x32xf32>
    %37 = arith.mulf %20, %28 : vector<2x32xf32>
    %38 = arith.addf %36, %37 : vector<2x32xf32>
    %39 = math.tanh %38 : vector<2x32xf32>
    %40 = arith.mulf %34, %39 : vector<2x32xf32>
    %c0_21 = arith.constant 0 : index
    %c0_22 = arith.constant 0 : index
    %41 = vector.load %arg7[%c0_21, %c0_22] : memref<2x32xf32, #tpu.memory_space<vmem>>, vector<2x32xf32>
    tpu.vector_store %arg7[%c0_21, %c0_22], %38 {strides = array<i32>} : memref<2x32xf32, #tpu.memory_space<vmem>>, vector<2x32xf32>,
    %c0_23 = arith.constant 0 : index
    %c0_24 = arith.constant 0 : index
    %42 = vector.load %arg6[%c0_23, %c0_24] : memref<2x32xf32, #tpu.memory_space<vmem>>, vector<2x32xf32>
    tpu.vector_store %arg6[%c0_23, %c0_24], %40 {strides = array<i32>} : memref<2x32xf32, #tpu.memory_space<vmem>>, vector<2x32xf32>,
    %43 = vector.broadcast %c0_i32 : i32 to vector<2x1xi32>
    %44 = arith.cmpi slt, %43, %6 : vector<2x1xi32>
    %cst_25 = arith.constant 0.000000e+00 : f32
    %45 = vector.shape_cast %44 : vector<2x1xi1> to vector<2x1xi1>
    %46 = vector.broadcast %45 : vector<2x1xi1> to vector<2x32xi1>
    %47 = vector.broadcast %cst_25 : f32 to vector<2x32xf32>
    %48 = arith.select %46, %40, %47 : vector<2x32xi1>, vector<2x32xf32>
    %49 = arith.index_cast %c0_i32 : i32 to index
    %c0_26 = arith.constant 0 : index
    %c0_27 = arith.constant 0 : index
    %50 = vector.load %arg9[%49, %c0_26, %c0_27] : memref<8x2x32xf32, #tpu.memory_space<vmem>>, vector<1x2x32xf32>
    %51 = vector.shape_cast %50 : vector<1x2x32xf32> to vector<2x32xf32>
    %52 = vector.shape_cast %48 : vector<2x32xf32> to vector<1x2x32xf32>
    tpu.vector_store %arg9[%49, %c0_26, %c0_27], %52 {strides = array<i32>} : memref<8x2x32xf32, #tpu.memory_space<vmem>>, vector<1x2x32xf32>,
    %c1_i32 = arith.constant 1 : i32
    %53 = arith.addi %c0_i32, %c1_i32 : i32
    %54 = vector.broadcast %53 : i32 to vector<2x1xi32>
    %55 = arith.cmpi eq, %6, %54 : vector<2x1xi32>
    %c0_28 = arith.constant 0 : index
    %c0_29 = arith.constant 0 : index
    %56 = vector.load %arg8[%c0_28, %c0_29] : memref<2x32xf32, #tpu.memory_space<vmem>>, vector<2x32xf32>
    %57 = vector.shape_cast %55 : vector<2x1xi1> to vector<2x1xi1>
    %58 = vector.broadcast %57 : vector<2x1xi1> to vector<2x32xi1>
    %59 = arith.select %58, %40, %56 : vector<2x32xi1>, vector<2x32xf32>
    %c0_30 = arith.constant 0 : index
    %c0_31 = arith.constant 0 : index
    %60 = vector.load %arg8[%c0_30, %c0_31] : memref<2x32xf32, #tpu.memory_space<vmem>>, vector<2x32xf32>
    tpu.vector_store %arg8[%c0_30, %c0_31], %59 {strides = array<i32>} : memref<2x32xf32, #tpu.memory_space<vmem>>, vector<2x32xf32>,
    %c1_i32_32 = arith.constant 1 : i32
    %61 = arith.index_cast %c1_i32_32 : i32 to index
    %c0_33 = arith.constant 0 : index
    %c0_34 = arith.constant 0 : index
    %62 = vector.load %arg0[%61, %c0_33, %c0_34] : memref<8x2x128xf32, #tpu.memory_space<vmem>>, vector<1x2x128xf32>
    %63 = vector.shape_cast %62 : vector<1x2x128xf32> to vector<2x128xf32>
    %c0_35 = arith.constant 0 : index
    %c0_36 = arith.constant 0 : index
    %64 = vector.load %arg6[%c0_35, %c0_36] : memref<2x32xf32, #tpu.memory_space<vmem>>, vector<2x32xf32>
    %65 = arith.truncf %64 : vector<2x32xf32> to vector<2x32xbf16>
    %cst_37 = arith.constant dense<0.000000e+00> : vector<2x128xf32>
    %66 = tpu.matmul %65, %7, %cst_37 {dimension_numbers = #tpu.dot_dimension_numbers<[1], [0], [0], [1], [0, 0, 1, 1], [], []>} : vector<2x32xbf16>, vector<32x128xbf16>, vector<2x128xf32> -> vector<2x128xf32>
    %67 = arith.addf %63, %66 : vector<2x128xf32>
    %68 = vector.extract_strided_slice %67 {offsets = [0, 0], sizes = [2, 32], strides = [1, 1]} : vector<2x128xf32> to vector<2x32xf32>
    %69 = arith.negf %68 : vector<2x32xf32>
    %70 = math.exp %69 : vector<2x32xf32>
    %cst_38 = arith.constant 1.000000e+00 : f32
    %71 = vector.broadcast %cst_38 : f32 to vector<2x32xf32>
    %72 = arith.addf %71, %70 : vector<2x32xf32>
    %73 = arith.divf %71, %72 : vector<2x32xf32>
    %74 = vector.extract_strided_slice %67 {offsets = [0, 32], sizes = [2, 32], strides = [1, 1]} : vector<2x128xf32> to vector<2x32xf32>
    %75 = arith.negf %74 : vector<2x32xf32>
    %76 = math.exp %75 : vector<2x32xf32>
    %cst_39 = arith.constant 1.000000e+00 : f32
    %77 = vector.broadcast %cst_39 : f32 to vector<2x32xf32>
    %78 = arith.addf %77, %76 : vector<2x32xf32>
    %79 = arith.divf %77, %78 : vector<2x32xf32>
    %80 = vector.extract_strided_slice %67 {offsets = [0, 64], sizes = [2, 32], strides = [1, 1]} : vector<2x128xf32> to vector<2x32xf32>
    %81 = math.tanh %80 : vector<2x32xf32>
    %82 = vector.extract_strided_slice %67 {offsets = [0, 96], sizes = [2, 32], strides = [1, 1]} : vector<2x128xf32> to vector<2x32xf32>
    %83 = arith.negf %82 : vector<2x32xf32>
    %84 = math.exp %83 : vector<2x32xf32>
    %cst_40 = arith.constant 1.000000e+00 : f32
    %85 = vector.broadcast %cst_40 : f32 to vector<2x32xf32>
    %86 = arith.addf %85, %84 : vector<2x32xf32>
    %87 = arith.divf %85, %86 : vector<2x32xf32>
    %c0_41 = arith.constant 0 : index
    %c0_42 = arith.constant 0 : index
    %88 = vector.load %arg7[%c0_41, %c0_42] : memref<2x32xf32, #tpu.memory_space<vmem>>, vector<2x32xf32>
    %89 = arith.mulf %79, %88 : vector<2x32xf32>
    %90 = arith.mulf %73, %81 : vector<2x32xf32>
    %91 = arith.addf %89, %90 : vector<2x32xf32>
    %92 = math.tanh %91 : vector<2x32xf32>
    %93 = arith.mulf %87, %92 : vector<2x32xf32>
    %c0_43 = arith.constant 0 : index
    %c0_44 = arith.constant 0 : index
    %94 = vector.load %arg7[%c0_43, %c0_44] : memref<2x32xf32, #tpu.memory_space<vmem>>, vector<2x32xf32>
    tpu.vector_store %arg7[%c0_43, %c0_44], %91 {strides = array<i32>} : memref<2x32xf32, #tpu.memory_space<vmem>>, vector<2x32xf32>,
    %c0_45 = arith.constant 0 : index
    %c0_46 = arith.constant 0 : index
    %95 = vector.load %arg6[%c0_45, %c0_46] : memref<2x32xf32, #tpu.memory_space<vmem>>, vector<2x32xf32>
    tpu.vector_store %arg6[%c0_45, %c0_46], %93 {strides = array<i32>} : memref<2x32xf32, #tpu.memory_space<vmem>>, vector<2x32xf32>,
    %96 = vector.broadcast %c1_i32_32 : i32 to vector<2x1xi32>
    %97 = arith.cmpi slt, %96, %6 : vector<2x1xi32>
    %cst_47 = arith.constant 0.000000e+00 : f32
    %98 = vector.shape_cast %97 : vector<2x1xi1> to vector<2x1xi1>
    %99 = vector.broadcast %98 : vector<2x1xi1> to vector<2x32xi1>
    %100 = vector.broadcast %cst_47 : f32 to vector<2x32xf32>
    %101 = arith.select %99, %93, %100 : vector<2x32xi1>, vector<2x32xf32>
    %102 = arith.index_cast %c1_i32_32 : i32 to index
    %c0_48 = arith.constant 0 : index
    %c0_49 = arith.constant 0 : index
    %103 = vector.load %arg9[%102, %c0_48, %c0_49] : memref<8x2x32xf32, #tpu.memory_space<vmem>>, vector<1x2x32xf32>
    %104 = vector.shape_cast %103 : vector<1x2x32xf32> to vector<2x32xf32>
    %105 = vector.shape_cast %101 : vector<2x32xf32> to vector<1x2x32xf32>
    tpu.vector_store %arg9[%102, %c0_48, %c0_49], %105 {strides = array<i32>} : memref<8x2x32xf32, #tpu.memory_space<vmem>>, vector<1x2x32xf32>,
    %c1_i32_50 = arith.constant 1 : i32
    %106 = arith.addi %c1_i32_32, %c1_i32_50 : i32
    %107 = vector.broadcast %106 : i32 to vector<2x1xi32>
    %108 = arith.cmpi eq, %6, %107 : vector<2x1xi32>
    %c0_51 = arith.constant 0 : index
    %c0_52 = arith.constant 0 : index
    %109 = vector.load %arg8[%c0_51, %c0_52] : memref<2x32xf32, #tpu.memory_space<vmem>>, vector<2x32xf32>
    %110 = vector.shape_cast %108 : vector<2x1xi1> to vector<2x1xi1>
    %111 = vector.broadcast %110 : vector<2x1xi1> to vector<2x32xi1>
    %112 = arith.select %111, %93, %109 : vector<2x32xi1>, vector<2x32xf32>
    %c0_53 = arith.constant 0 : index
    %c0_54 = arith.constant 0 : index
    %113 = vector.load %arg8[%c0_53, %c0_54] : memref<2x32xf32, #tpu.memory_space<vmem>>, vector<2x32xf32>
    tpu.vector_store %arg8[%c0_53, %c0_54], %112 {strides = array<i32>} : memref<2x32xf32, #tpu.memory_space<vmem>>, vector<2x32xf32>,
    %c2_i32 = arith.constant 2 : i32
    %114 = arith.index_cast %c2_i32 : i32 to index
    %c0_55 = arith.constant 0 : index
    %c0_56 = arith.constant 0 : index
    %115 = vector.load %arg0[%114, %c0_55, %c0_56] : memref<8x2x128xf32, #tpu.memory_space<vmem>>, vector<1x2x128xf32>
    %116 = vector.shape_cast %115 : vector<1x2x128xf32> to vector<2x128xf32>
    %c0_57 = arith.constant 0 : index
    %c0_58 = arith.constant 0 : index
    %117 = vector.load %arg6[%c0_57, %c0_58] : memref<2x32xf32, #tpu.memory_space<vmem>>, vector<2x32xf32>
    %118 = arith.truncf %117 : vector<2x32xf32> to vector<2x32xbf16>
    %cst_59 = arith.constant dense<0.000000e+00> : vector<2x128xf32>
    %119 = tpu.matmul %118, %7, %cst_59 {dimension_numbers = #tpu.dot_dimension_numbers<[1], [0], [0], [1], [0, 0, 1, 1], [], []>} : vector<2x32xbf16>, vector<32x128xbf16>, vector<2x128xf32> -> vector<2x128xf32>
    %120 = arith.addf %116, %119 : vector<2x128xf32>
    %121 = vector.extract_strided_slice %120 {offsets = [0, 0], sizes = [2, 32], strides = [1, 1]} : vector<2x128xf32> to vector<2x32xf32>
    %122 = arith.negf %121 : vector<2x32xf32>
    %123 = math.exp %122 : vector<2x32xf32>
    %cst_60 = arith.constant 1.000000e+00 : f32
    %124 = vector.broadcast %cst_60 : f32 to vector<2x32xf32>
    %125 = arith.addf %124, %123 : vector<2x32xf32>
    %126 = arith.divf %124, %125 : vector<2x32xf32>
    %127 = vector.extract_strided_slice %120 {offsets = [0, 32], sizes = [2, 32], strides = [1, 1]} : vector<2x128xf32> to vector<2x32xf32>
    %128 = arith.negf %127 : vector<2x32xf32>
    %129 = math.exp %128 : vector<2x32xf32>
    %cst_61 = arith.constant 1.000000e+00 : f32
    %130 = vector.broadcast %cst_61 : f32 to vector<2x32xf32>
    %131 = arith.addf %130, %129 : vector<2x32xf32>
    %132 = arith.divf %130, %131 : vector<2x32xf32>
    %133 = vector.extract_strided_slice %120 {offsets = [0, 64], sizes = [2, 32], strides = [1, 1]} : vector<2x128xf32> to vector<2x32xf32>
    %134 = math.tanh %133 : vector<2x32xf32>
    %135 = vector.extract_strided_slice %120 {offsets = [0, 96], sizes = [2, 32], strides = [1, 1]} : vector<2x128xf32> to vector<2x32xf32>
    %136 = arith.negf %135 : vector<2x32xf32>
    %137 = math.exp %136 : vector<2x32xf32>
    %cst_62 = arith.constant 1.000000e+00 : f32
    %138 = vector.broadcast %cst_62 : f32 to vector<2x32xf32>
    %139 = arith.addf %138, %137 : vector<2x32xf32>
    %140 = arith.divf %138, %139 : vector<2x32xf32>
    %c0_63 = arith.constant 0 : index
    %c0_64 = arith.constant 0 : index
    %141 = vector.load %arg7[%c0_63, %c0_64] : memref<2x32xf32, #tpu.memory_space<vmem>>, vector<2x32xf32>
    %142 = arith.mulf %132, %141 : vector<2x32xf32>
    %143 = arith.mulf %126, %134 : vector<2x32xf32>
    %144 = arith.addf %142, %143 : vector<2x32xf32>
    %145 = math.tanh %144 : vector<2x32xf32>
    %146 = arith.mulf %140, %145 : vector<2x32xf32>
    %c0_65 = arith.constant 0 : index
    %c0_66 = arith.constant 0 : index
    %147 = vector.load %arg7[%c0_65, %c0_66] : memref<2x32xf32, #tpu.memory_space<vmem>>, vector<2x32xf32>
    tpu.vector_store %arg7[%c0_65, %c0_66], %144 {strides = array<i32>} : memref<2x32xf32, #tpu.memory_space<vmem>>, vector<2x32xf32>,
    %c0_67 = arith.constant 0 : index
    %c0_68 = arith.constant 0 : index
    %148 = vector.load %arg6[%c0_67, %c0_68] : memref<2x32xf32, #tpu.memory_space<vmem>>, vector<2x32xf32>
    tpu.vector_store %arg6[%c0_67, %c0_68], %146 {strides = array<i32>} : memref<2x32xf32, #tpu.memory_space<vmem>>, vector<2x32xf32>,
    %149 = vector.broadcast %c2_i32 : i32 to vector<2x1xi32>
    %150 = arith.cmpi slt, %149, %6 : vector<2x1xi32>
    %cst_69 = arith.constant 0.000000e+00 : f32
    %151 = vector.shape_cast %150 : vector<2x1xi1> to vector<2x1xi1>
    %152 = vector.broadcast %151 : vector<2x1xi1> to vector<2x32xi1>
    %153 = vector.broadcast %cst_69 : f32 to vector<2x32xf32>
    %154 = arith.select %152, %146, %153 : vector<2x32xi1>, vector<2x32xf32>
    %155 = arith.index_cast %c2_i32 : i32 to index
    %c0_70 = arith.constant 0 : index
    %c0_71 = arith.constant 0 : index
    %156 = vector.load %arg9[%155, %c0_70, %c0_71] : memref<8x2x32xf32, #tpu.memory_space<vmem>>, vector<1x2x32xf32>
    %157 = vector.shape_cast %156 : vector<1x2x32xf32> to vector<2x32xf32>
    %158 = vector.shape_cast %154 : vector<2x32xf32> to vector<1x2x32xf32>
    tpu.vector_store %arg9[%155, %c0_70, %c0_71], %158 {strides = array<i32>} : memref<8x2x32xf32, #tpu.memory_space<vmem>>, vector<1x2x32xf32>,
    %c1_i32_72 = arith.constant 1 : i32
    %159 = arith.addi %c2_i32, %c1_i32_72 : i32
    %160 = vector.broadcast %159 : i32 to vector<2x1xi32>
    %161 = arith.cmpi eq, %6, %160 : vector<2x1xi32>
    %c0_73 = arith.constant 0 : index
    %c0_74 = arith.constant 0 : index
    %162 = vector.load %arg8[%c0_73, %c0_74] : memref<2x32xf32, #tpu.memory_space<vmem>>, vector<2x32xf32>
    %163 = vector.shape_cast %161 : vector<2x1xi1> to vector<2x1xi1>
    %164 = vector.broadcast %163 : vector<2x1xi1> to vector<2x32xi1>
    %165 = arith.select %164, %146, %162 : vector<2x32xi1>, vector<2x32xf32>
    %c0_75 = arith.constant 0 : index
    %c0_76 = arith.constant 0 : index
    %166 = vector.load %arg8[%c0_75, %c0_76] : memref<2x32xf32, #tpu.memory_space<vmem>>, vector<2x32xf32>
    tpu.vector_store %arg8[%c0_75, %c0_76], %165 {strides = array<i32>} : memref<2x32xf32, #tpu.memory_space<vmem>>, vector<2x32xf32>,
    %c3_i32 = arith.constant 3 : i32
    %167 = arith.index_cast %c3_i32 : i32 to index
    %c0_77 = arith.constant 0 : index
    %c0_78 = arith.constant 0 : index
    %168 = vector.load %arg0[%167, %c0_77, %c0_78] : memref<8x2x128xf32, #tpu.memory_space<vmem>>, vector<1x2x128xf32>
    %169 = vector.shape_cast %168 : vector<1x2x128xf32> to vector<2x128xf32>
    %c0_79 = arith.constant 0 : index
    %c0_80 = arith.constant 0 : index
    %170 = vector.load %arg6[%c0_79, %c0_80] : memref<2x32xf32, #tpu.memory_space<vmem>>, vector<2x32xf32>
    %171 = arith.truncf %170 : vector<2x32xf32> to vector<2x32xbf16>
    %cst_81 = arith.constant dense<0.000000e+00> : vector<2x128xf32>
    %172 = tpu.matmul %171, %7, %cst_81 {dimension_numbers = #tpu.dot_dimension_numbers<[1], [0], [0], [1], [0, 0, 1, 1], [], []>} : vector<2x32xbf16>, vector<32x128xbf16>, vector<2x128xf32> -> vector<2x128xf32>
    %173 = arith.addf %169, %172 : vector<2x128xf32>
    %174 = vector.extract_strided_slice %173 {offsets = [0, 0], sizes = [2, 32], strides = [1, 1]} : vector<2x128xf32> to vector<2x32xf32>
    %175 = arith.negf %174 : vector<2x32xf32>
    %176 = math.exp %175 : vector<2x32xf32>
    %cst_82 = arith.constant 1.000000e+00 : f32
    %177 = vector.broadcast %cst_82 : f32 to vector<2x32xf32>
    %178 = arith.addf %177, %176 : vector<2x32xf32>
    %179 = arith.divf %177, %178 : vector<2x32xf32>
    %180 = vector.extract_strided_slice %173 {offsets = [0, 32], sizes = [2, 32], strides = [1, 1]} : vector<2x128xf32> to vector<2x32xf32>
    %181 = arith.negf %180 : vector<2x32xf32>
    %182 = math.exp %181 : vector<2x32xf32>
    %cst_83 = arith.constant 1.000000e+00 : f32
    %183 = vector.broadcast %cst_83 : f32 to vector<2x32xf32>
    %184 = arith.addf %183, %182 : vector<2x32xf32>
    %185 = arith.divf %183, %184 : vector<2x32xf32>
    %186 = vector.extract_strided_slice %173 {offsets = [0, 64], sizes = [2, 32], strides = [1, 1]} : vector<2x128xf32> to vector<2x32xf32>
    %187 = math.tanh %186 : vector<2x32xf32>
    %188 = vector.extract_strided_slice %173 {offsets = [0, 96], sizes = [2, 32], strides = [1, 1]} : vector<2x128xf32> to vector<2x32xf32>
    %189 = arith.negf %188 : vector<2x32xf32>
    %190 = math.exp %189 : vector<2x32xf32>
    %cst_84 = arith.constant 1.000000e+00 : f32
    %191 = vector.broadcast %cst_84 : f32 to vector<2x32xf32>
    %192 = arith.addf %191, %190 : vector<2x32xf32>
    %193 = arith.divf %191, %192 : vector<2x32xf32>
    %c0_85 = arith.constant 0 : index
    %c0_86 = arith.constant 0 : index
    %194 = vector.load %arg7[%c0_85, %c0_86] : memref<2x32xf32, #tpu.memory_space<vmem>>, vector<2x32xf32>
    %195 = arith.mulf %185, %194 : vector<2x32xf32>
    %196 = arith.mulf %179, %187 : vector<2x32xf32>
    %197 = arith.addf %195, %196 : vector<2x32xf32>
    %198 = math.tanh %197 : vector<2x32xf32>
    %199 = arith.mulf %193, %198 : vector<2x32xf32>
    %c0_87 = arith.constant 0 : index
    %c0_88 = arith.constant 0 : index
    %200 = vector.load %arg7[%c0_87, %c0_88] : memref<2x32xf32, #tpu.memory_space<vmem>>, vector<2x32xf32>
    tpu.vector_store %arg7[%c0_87, %c0_88], %197 {strides = array<i32>} : memref<2x32xf32, #tpu.memory_space<vmem>>, vector<2x32xf32>,
    %c0_89 = arith.constant 0 : index
    %c0_90 = arith.constant 0 : index
    %201 = vector.load %arg6[%c0_89, %c0_90] : memref<2x32xf32, #tpu.memory_space<vmem>>, vector<2x32xf32>
    tpu.vector_store %arg6[%c0_89, %c0_90], %199 {strides = array<i32>} : memref<2x32xf32, #tpu.memory_space<vmem>>, vector<2x32xf32>,
    %202 = vector.broadcast %c3_i32 : i32 to vector<2x1xi32>
    %203 = arith.cmpi slt, %202, %6 : vector<2x1xi32>
    %cst_91 = arith.constant 0.000000e+00 : f32
    %204 = vector.shape_cast %203 : vector<2x1xi1> to vector<2x1xi1>
    %205 = vector.broadcast %204 : vector<2x1xi1> to vector<2x32xi1>
    %206 = vector.broadcast %cst_91 : f32 to vector<2x32xf32>
    %207 = arith.select %205, %199, %206 : vector<2x32xi1>, vector<2x32xf32>
    %208 = arith.index_cast %c3_i32 : i32 to index
    %c0_92 = arith.constant 0 : index
    %c0_93 = arith.constant 0 : index
    %209 = vector.load %arg9[%208, %c0_92, %c0_93] : memref<8x2x32xf32, #tpu.memory_space<vmem>>, vector<1x2x32xf32>
    %210 = vector.shape_cast %209 : vector<1x2x32xf32> to vector<2x32xf32>
    %211 = vector.shape_cast %207 : vector<2x32xf32> to vector<1x2x32xf32>
    tpu.vector_store %arg9[%208, %c0_92, %c0_93], %211 {strides = array<i32>} : memref<8x2x32xf32, #tpu.memory_space<vmem>>, vector<1x2x32xf32>,
    %c1_i32_94 = arith.constant 1 : i32
    %212 = arith.addi %c3_i32, %c1_i32_94 : i32
    %213 = vector.broadcast %212 : i32 to vector<2x1xi32>
    %214 = arith.cmpi eq, %6, %213 : vector<2x1xi32>
    %c0_95 = arith.constant 0 : index
    %c0_96 = arith.constant 0 : index
    %215 = vector.load %arg8[%c0_95, %c0_96] : memref<2x32xf32, #tpu.memory_space<vmem>>, vector<2x32xf32>
    %216 = vector.shape_cast %214 : vector<2x1xi1> to vector<2x1xi1>
    %217 = vector.broadcast %216 : vector<2x1xi1> to vector<2x32xi1>
    %218 = arith.select %217, %199, %215 : vector<2x32xi1>, vector<2x32xf32>
    %c0_97 = arith.constant 0 : index
    %c0_98 = arith.constant 0 : index
    %219 = vector.load %arg8[%c0_97, %c0_98] : memref<2x32xf32, #tpu.memory_space<vmem>>, vector<2x32xf32>
    tpu.vector_store %arg8[%c0_97, %c0_98], %218 {strides = array<i32>} : memref<2x32xf32, #tpu.memory_space<vmem>>, vector<2x32xf32>,
    %c4_i32 = arith.constant 4 : i32
    %220 = arith.index_cast %c4_i32 : i32 to index
    %c0_99 = arith.constant 0 : index
    %c0_100 = arith.constant 0 : index
    %221 = vector.load %arg0[%220, %c0_99, %c0_100] : memref<8x2x128xf32, #tpu.memory_space<vmem>>, vector<1x2x128xf32>
    %222 = vector.shape_cast %221 : vector<1x2x128xf32> to vector<2x128xf32>
    %c0_101 = arith.constant 0 : index
    %c0_102 = arith.constant 0 : index
    %223 = vector.load %arg6[%c0_101, %c0_102] : memref<2x32xf32, #tpu.memory_space<vmem>>, vector<2x32xf32>
    %224 = arith.truncf %223 : vector<2x32xf32> to vector<2x32xbf16>
    %cst_103 = arith.constant dense<0.000000e+00> : vector<2x128xf32>
    %225 = tpu.matmul %224, %7, %cst_103 {dimension_numbers = #tpu.dot_dimension_numbers<[1], [0], [0], [1], [0, 0, 1, 1], [], []>} : vector<2x32xbf16>, vector<32x128xbf16>, vector<2x128xf32> -> vector<2x128xf32>
    %226 = arith.addf %222, %225 : vector<2x128xf32>
    %227 = vector.extract_strided_slice %226 {offsets = [0, 0], sizes = [2, 32], strides = [1, 1]} : vector<2x128xf32> to vector<2x32xf32>
    %228 = arith.negf %227 : vector<2x32xf32>
    %229 = math.exp %228 : vector<2x32xf32>
    %cst_104 = arith.constant 1.000000e+00 : f32
    %230 = vector.broadcast %cst_104 : f32 to vector<2x32xf32>
    %231 = arith.addf %230, %229 : vector<2x32xf32>
    %232 = arith.divf %230, %231 : vector<2x32xf32>
    %233 = vector.extract_strided_slice %226 {offsets = [0, 32], sizes = [2, 32], strides = [1, 1]} : vector<2x128xf32> to vector<2x32xf32>
    %234 = arith.negf %233 : vector<2x32xf32>
    %235 = math.exp %234 : vector<2x32xf32>
    %cst_105 = arith.constant 1.000000e+00 : f32
    %236 = vector.broadcast %cst_105 : f32 to vector<2x32xf32>
    %237 = arith.addf %236, %235 : vector<2x32xf32>
    %238 = arith.divf %236, %237 : vector<2x32xf32>
    %239 = vector.extract_strided_slice %226 {offsets = [0, 64], sizes = [2, 32], strides = [1, 1]} : vector<2x128xf32> to vector<2x32xf32>
    %240 = math.tanh %239 : vector<2x32xf32>
    %241 = vector.extract_strided_slice %226 {offsets = [0, 96], sizes = [2, 32], strides = [1, 1]} : vector<2x128xf32> to vector<2x32xf32>
    %242 = arith.negf %241 : vector<2x32xf32>
    %243 = math.exp %242 : vector<2x32xf32>
    %cst_106 = arith.constant 1.000000e+00 : f32
    %244 = vector.broadcast %cst_106 : f32 to vector<2x32xf32>
    %245 = arith.addf %244, %243 : vector<2x32xf32>
    %246 = arith.divf %244, %245 : vector<2x32xf32>
    %c0_107 = arith.constant 0 : index
    %c0_108 = arith.constant 0 : index
    %247 = vector.load %arg7[%c0_107, %c0_108] : memref<2x32xf32, #tpu.memory_space<vmem>>, vector<2x32xf32>
    %248 = arith.mulf %238, %247 : vector<2x32xf32>
    %249 = arith.mulf %232, %240 : vector<2x32xf32>
    %250 = arith.addf %248, %249 : vector<2x32xf32>
    %251 = math.tanh %250 : vector<2x32xf32>
    %252 = arith.mulf %246, %251 : vector<2x32xf32>
    %c0_109 = arith.constant 0 : index
    %c0_110 = arith.constant 0 : index
    %253 = vector.load %arg7[%c0_109, %c0_110] : memref<2x32xf32, #tpu.memory_space<vmem>>, vector<2x32xf32>
    tpu.vector_store %arg7[%c0_109, %c0_110], %250 {strides = array<i32>} : memref<2x32xf32, #tpu.memory_space<vmem>>, vector<2x32xf32>,
    %c0_111 = arith.constant 0 : index
    %c0_112 = arith.constant 0 : index
    %254 = vector.load %arg6[%c0_111, %c0_112] : memref<2x32xf32, #tpu.memory_space<vmem>>, vector<2x32xf32>
    tpu.vector_store %arg6[%c0_111, %c0_112], %252 {strides = array<i32>} : memref<2x32xf32, #tpu.memory_space<vmem>>, vector<2x32xf32>,
    %255 = vector.broadcast %c4_i32 : i32 to vector<2x1xi32>
    %256 = arith.cmpi slt, %255, %6 : vector<2x1xi32>
    %cst_113 = arith.constant 0.000000e+00 : f32
    %257 = vector.shape_cast %256 : vector<2x1xi1> to vector<2x1xi1>
    %258 = vector.broadcast %257 : vector<2x1xi1> to vector<2x32xi1>
    %259 = vector.broadcast %cst_113 : f32 to vector<2x32xf32>
    %260 = arith.select %258, %252, %259 : vector<2x32xi1>, vector<2x32xf32>
    %261 = arith.index_cast %c4_i32 : i32 to index
    %c0_114 = arith.constant 0 : index
    %c0_115 = arith.constant 0 : index
    %262 = vector.load %arg9[%261, %c0_114, %c0_115] : memref<8x2x32xf32, #tpu.memory_space<vmem>>, vector<1x2x32xf32>
    %263 = vector.shape_cast %262 : vector<1x2x32xf32> to vector<2x32xf32>
    %264 = vector.shape_cast %260 : vector<2x32xf32> to vector<1x2x32xf32>
    tpu.vector_store %arg9[%261, %c0_114, %c0_115], %264 {strides = array<i32>} : memref<8x2x32xf32, #tpu.memory_space<vmem>>, vector<1x2x32xf32>,
    %c1_i32_116 = arith.constant 1 : i32
    %265 = arith.addi %c4_i32, %c1_i32_116 : i32
    %266 = vector.broadcast %265 : i32 to vector<2x1xi32>
    %267 = arith.cmpi eq, %6, %266 : vector<2x1xi32>
    %c0_117 = arith.constant 0 : index
    %c0_118 = arith.constant 0 : index
    %268 = vector.load %arg8[%c0_117, %c0_118] : memref<2x32xf32, #tpu.memory_space<vmem>>, vector<2x32xf32>
    %269 = vector.shape_cast %267 : vector<2x1xi1> to vector<2x1xi1>
    %270 = vector.broadcast %269 : vector<2x1xi1> to vector<2x32xi1>
    %271 = arith.select %270, %252, %268 : vector<2x32xi1>, vector<2x32xf32>
    %c0_119 = arith.constant 0 : index
    %c0_120 = arith.constant 0 : index
    %272 = vector.load %arg8[%c0_119, %c0_120] : memref<2x32xf32, #tpu.memory_space<vmem>>, vector<2x32xf32>
    tpu.vector_store %arg8[%c0_119, %c0_120], %271 {strides = array<i32>} : memref<2x32xf32, #tpu.memory_space<vmem>>, vector<2x32xf32>,
    %c5_i32 = arith.constant 5 : i32
    %273 = arith.index_cast %c5_i32 : i32 to index
    %c0_121 = arith.constant 0 : index
    %c0_122 = arith.constant 0 : index
    %274 = vector.load %arg0[%273, %c0_121, %c0_122] : memref<8x2x128xf32, #tpu.memory_space<vmem>>, vector<1x2x128xf32>
    %275 = vector.shape_cast %274 : vector<1x2x128xf32> to vector<2x128xf32>
    %c0_123 = arith.constant 0 : index
    %c0_124 = arith.constant 0 : index
    %276 = vector.load %arg6[%c0_123, %c0_124] : memref<2x32xf32, #tpu.memory_space<vmem>>, vector<2x32xf32>
    %277 = arith.truncf %276 : vector<2x32xf32> to vector<2x32xbf16>
    %cst_125 = arith.constant dense<0.000000e+00> : vector<2x128xf32>
    %278 = tpu.matmul %277, %7, %cst_125 {dimension_numbers = #tpu.dot_dimension_numbers<[1], [0], [0], [1], [0, 0, 1, 1], [], []>} : vector<2x32xbf16>, vector<32x128xbf16>, vector<2x128xf32> -> vector<2x128xf32>
    %279 = arith.addf %275, %278 : vector<2x128xf32>
    %280 = vector.extract_strided_slice %279 {offsets = [0, 0], sizes = [2, 32], strides = [1, 1]} : vector<2x128xf32> to vector<2x32xf32>
    %281 = arith.negf %280 : vector<2x32xf32>
    %282 = math.exp %281 : vector<2x32xf32>
    %cst_126 = arith.constant 1.000000e+00 : f32
    %283 = vector.broadcast %cst_126 : f32 to vector<2x32xf32>
    %284 = arith.addf %283, %282 : vector<2x32xf32>
    %285 = arith.divf %283, %284 : vector<2x32xf32>
    %286 = vector.extract_strided_slice %279 {offsets = [0, 32], sizes = [2, 32], strides = [1, 1]} : vector<2x128xf32> to vector<2x32xf32>
    %287 = arith.negf %286 : vector<2x32xf32>
    %288 = math.exp %287 : vector<2x32xf32>
    %cst_127 = arith.constant 1.000000e+00 : f32
    %289 = vector.broadcast %cst_127 : f32 to vector<2x32xf32>
    %290 = arith.addf %289, %288 : vector<2x32xf32>
    %291 = arith.divf %289, %290 : vector<2x32xf32>
    %292 = vector.extract_strided_slice %279 {offsets = [0, 64], sizes = [2, 32], strides = [1, 1]} : vector<2x128xf32> to vector<2x32xf32>
    %293 = math.tanh %292 : vector<2x32xf32>
    %294 = vector.extract_strided_slice %279 {offsets = [0, 96], sizes = [2, 32], strides = [1, 1]} : vector<2x128xf32> to vector<2x32xf32>
    %295 = arith.negf %294 : vector<2x32xf32>
    %296 = math.exp %295 : vector<2x32xf32>
    %cst_128 = arith.constant 1.000000e+00 : f32
    %297 = vector.broadcast %cst_128 : f32 to vector<2x32xf32>
    %298 = arith.addf %297, %296 : vector<2x32xf32>
    %299 = arith.divf %297, %298 : vector<2x32xf32>
    %c0_129 = arith.constant 0 : index
    %c0_130 = arith.constant 0 : index
    %300 = vector.load %arg7[%c0_129, %c0_130] : memref<2x32xf32, #tpu.memory_space<vmem>>, vector<2x32xf32>
    %301 = arith.mulf %291, %300 : vector<2x32xf32>
    %302 = arith.mulf %285, %293 : vector<2x32xf32>
    %303 = arith.addf %301, %302 : vector<2x32xf32>
    %304 = math.tanh %303 : vector<2x32xf32>
    %305 = arith.mulf %299, %304 : vector<2x32xf32>
    %c0_131 = arith.constant 0 : index
    %c0_132 = arith.constant 0 : index
    %306 = vector.load %arg7[%c0_131, %c0_132] : memref<2x32xf32, #tpu.memory_space<vmem>>, vector<2x32xf32>
    tpu.vector_store %arg7[%c0_131, %c0_132], %303 {strides = array<i32>} : memref<2x32xf32, #tpu.memory_space<vmem>>, vector<2x32xf32>,
    %c0_133 = arith.constant 0 : index
    %c0_134 = arith.constant 0 : index
    %307 = vector.load %arg6[%c0_133, %c0_134] : memref<2x32xf32, #tpu.memory_space<vmem>>, vector<2x32xf32>
    tpu.vector_store %arg6[%c0_133, %c0_134], %305 {strides = array<i32>} : memref<2x32xf32, #tpu.memory_space<vmem>>, vector<2x32xf32>,
    %308 = vector.broadcast %c5_i32 : i32 to vector<2x1xi32>
    %309 = arith.cmpi slt, %308, %6 : vector<2x1xi32>
    %cst_135 = arith.constant 0.000000e+00 : f32
    %310 = vector.shape_cast %309 : vector<2x1xi1> to vector<2x1xi1>
    %311 = vector.broadcast %310 : vector<2x1xi1> to vector<2x32xi1>
    %312 = vector.broadcast %cst_135 : f32 to vector<2x32xf32>
    %313 = arith.select %311, %305, %312 : vector<2x32xi1>, vector<2x32xf32>
    %314 = arith.index_cast %c5_i32 : i32 to index
    %c0_136 = arith.constant 0 : index
    %c0_137 = arith.constant 0 : index
    %315 = vector.load %arg9[%314, %c0_136, %c0_137] : memref<8x2x32xf32, #tpu.memory_space<vmem>>, vector<1x2x32xf32>
    %316 = vector.shape_cast %315 : vector<1x2x32xf32> to vector<2x32xf32>
    %317 = vector.shape_cast %313 : vector<2x32xf32> to vector<1x2x32xf32>
    tpu.vector_store %arg9[%314, %c0_136, %c0_137], %317 {strides = array<i32>} : memref<8x2x32xf32, #tpu.memory_space<vmem>>, vector<1x2x32xf32>,
    %c1_i32_138 = arith.constant 1 : i32
    %318 = arith.addi %c5_i32, %c1_i32_138 : i32
    %319 = vector.broadcast %318 : i32 to vector<2x1xi32>
    %320 = arith.cmpi eq, %6, %319 : vector<2x1xi32>
    %c0_139 = arith.constant 0 : index
    %c0_140 = arith.constant 0 : index
    %321 = vector.load %arg8[%c0_139, %c0_140] : memref<2x32xf32, #tpu.memory_space<vmem>>, vector<2x32xf32>
    %322 = vector.shape_cast %320 : vector<2x1xi1> to vector<2x1xi1>
    %323 = vector.broadcast %322 : vector<2x1xi1> to vector<2x32xi1>
    %324 = arith.select %323, %305, %321 : vector<2x32xi1>, vector<2x32xf32>
    %c0_141 = arith.constant 0 : index
    %c0_142 = arith.constant 0 : index
    %325 = vector.load %arg8[%c0_141, %c0_142] : memref<2x32xf32, #tpu.memory_space<vmem>>, vector<2x32xf32>
    tpu.vector_store %arg8[%c0_141, %c0_142], %324 {strides = array<i32>} : memref<2x32xf32, #tpu.memory_space<vmem>>, vector<2x32xf32>,
    %c6_i32 = arith.constant 6 : i32
    %326 = arith.index_cast %c6_i32 : i32 to index
    %c0_143 = arith.constant 0 : index
    %c0_144 = arith.constant 0 : index
    %327 = vector.load %arg0[%326, %c0_143, %c0_144] : memref<8x2x128xf32, #tpu.memory_space<vmem>>, vector<1x2x128xf32>
    %328 = vector.shape_cast %327 : vector<1x2x128xf32> to vector<2x128xf32>
    %c0_145 = arith.constant 0 : index
    %c0_146 = arith.constant 0 : index
    %329 = vector.load %arg6[%c0_145, %c0_146] : memref<2x32xf32, #tpu.memory_space<vmem>>, vector<2x32xf32>
    %330 = arith.truncf %329 : vector<2x32xf32> to vector<2x32xbf16>
    %cst_147 = arith.constant dense<0.000000e+00> : vector<2x128xf32>
    %331 = tpu.matmul %330, %7, %cst_147 {dimension_numbers = #tpu.dot_dimension_numbers<[1], [0], [0], [1], [0, 0, 1, 1], [], []>} : vector<2x32xbf16>, vector<32x128xbf16>, vector<2x128xf32> -> vector<2x128xf32>
    %332 = arith.addf %328, %331 : vector<2x128xf32>
    %333 = vector.extract_strided_slice %332 {offsets = [0, 0], sizes = [2, 32], strides = [1, 1]} : vector<2x128xf32> to vector<2x32xf32>
    %334 = arith.negf %333 : vector<2x32xf32>
    %335 = math.exp %334 : vector<2x32xf32>
    %cst_148 = arith.constant 1.000000e+00 : f32
    %336 = vector.broadcast %cst_148 : f32 to vector<2x32xf32>
    %337 = arith.addf %336, %335 : vector<2x32xf32>
    %338 = arith.divf %336, %337 : vector<2x32xf32>
    %339 = vector.extract_strided_slice %332 {offsets = [0, 32], sizes = [2, 32], strides = [1, 1]} : vector<2x128xf32> to vector<2x32xf32>
    %340 = arith.negf %339 : vector<2x32xf32>
    %341 = math.exp %340 : vector<2x32xf32>
    %cst_149 = arith.constant 1.000000e+00 : f32
    %342 = vector.broadcast %cst_149 : f32 to vector<2x32xf32>
    %343 = arith.addf %342, %341 : vector<2x32xf32>
    %344 = arith.divf %342, %343 : vector<2x32xf32>
    %345 = vector.extract_strided_slice %332 {offsets = [0, 64], sizes = [2, 32], strides = [1, 1]} : vector<2x128xf32> to vector<2x32xf32>
    %346 = math.tanh %345 : vector<2x32xf32>
    %347 = vector.extract_strided_slice %332 {offsets = [0, 96], sizes = [2, 32], strides = [1, 1]} : vector<2x128xf32> to vector<2x32xf32>
    %348 = arith.negf %347 : vector<2x32xf32>
    %349 = math.exp %348 : vector<2x32xf32>
    %cst_150 = arith.constant 1.000000e+00 : f32
    %350 = vector.broadcast %cst_150 : f32 to vector<2x32xf32>
    %351 = arith.addf %350, %349 : vector<2x32xf32>
    %352 = arith.divf %350, %351 : vector<2x32xf32>
    %c0_151 = arith.constant 0 : index
    %c0_152 = arith.constant 0 : index
    %353 = vector.load %arg7[%c0_151, %c0_152] : memref<2x32xf32, #tpu.memory_space<vmem>>, vector<2x32xf32>
    %354 = arith.mulf %344, %353 : vector<2x32xf32>
    %355 = arith.mulf %338, %346 : vector<2x32xf32>
    %356 = arith.addf %354, %355 : vector<2x32xf32>
    %357 = math.tanh %356 : vector<2x32xf32>
    %358 = arith.mulf %352, %357 : vector<2x32xf32>
    %c0_153 = arith.constant 0 : index
    %c0_154 = arith.constant 0 : index
    %359 = vector.load %arg7[%c0_153, %c0_154] : memref<2x32xf32, #tpu.memory_space<vmem>>, vector<2x32xf32>
    tpu.vector_store %arg7[%c0_153, %c0_154], %356 {strides = array<i32>} : memref<2x32xf32, #tpu.memory_space<vmem>>, vector<2x32xf32>,
    %c0_155 = arith.constant 0 : index
    %c0_156 = arith.constant 0 : index
    %360 = vector.load %arg6[%c0_155, %c0_156] : memref<2x32xf32, #tpu.memory_space<vmem>>, vector<2x32xf32>
    tpu.vector_store %arg6[%c0_155, %c0_156], %358 {strides = array<i32>} : memref<2x32xf32, #tpu.memory_space<vmem>>, vector<2x32xf32>,
    %361 = vector.broadcast %c6_i32 : i32 to vector<2x1xi32>
    %362 = arith.cmpi slt, %361, %6 : vector<2x1xi32>
    %cst_157 = arith.constant 0.000000e+00 : f32
    %363 = vector.shape_cast %362 : vector<2x1xi1> to vector<2x1xi1>
    %364 = vector.broadcast %363 : vector<2x1xi1> to vector<2x32xi1>
    %365 = vector.broadcast %cst_157 : f32 to vector<2x32xf32>
    %366 = arith.select %364, %358, %365 : vector<2x32xi1>, vector<2x32xf32>
    %367 = arith.index_cast %c6_i32 : i32 to index
    %c0_158 = arith.constant 0 : index
    %c0_159 = arith.constant 0 : index
    %368 = vector.load %arg9[%367, %c0_158, %c0_159] : memref<8x2x32xf32, #tpu.memory_space<vmem>>, vector<1x2x32xf32>
    %369 = vector.shape_cast %368 : vector<1x2x32xf32> to vector<2x32xf32>
    %370 = vector.shape_cast %366 : vector<2x32xf32> to vector<1x2x32xf32>
    tpu.vector_store %arg9[%367, %c0_158, %c0_159], %370 {strides = array<i32>} : memref<8x2x32xf32, #tpu.memory_space<vmem>>, vector<1x2x32xf32>,
    %c1_i32_160 = arith.constant 1 : i32
    %371 = arith.addi %c6_i32, %c1_i32_160 : i32
    %372 = vector.broadcast %371 : i32 to vector<2x1xi32>
    %373 = arith.cmpi eq, %6, %372 : vector<2x1xi32>
    %c0_161 = arith.constant 0 : index
    %c0_162 = arith.constant 0 : index
    %374 = vector.load %arg8[%c0_161, %c0_162] : memref<2x32xf32, #tpu.memory_space<vmem>>, vector<2x32xf32>
    %375 = vector.shape_cast %373 : vector<2x1xi1> to vector<2x1xi1>
    %376 = vector.broadcast %375 : vector<2x1xi1> to vector<2x32xi1>
    %377 = arith.select %376, %358, %374 : vector<2x32xi1>, vector<2x32xf32>
    %c0_163 = arith.constant 0 : index
    %c0_164 = arith.constant 0 : index
    %378 = vector.load %arg8[%c0_163, %c0_164] : memref<2x32xf32, #tpu.memory_space<vmem>>, vector<2x32xf32>
    tpu.vector_store %arg8[%c0_163, %c0_164], %377 {strides = array<i32>} : memref<2x32xf32, #tpu.memory_space<vmem>>, vector<2x32xf32>,
    %c7_i32 = arith.constant 7 : i32
    %379 = arith.index_cast %c7_i32 : i32 to index
    %c0_165 = arith.constant 0 : index
    %c0_166 = arith.constant 0 : index
    %380 = vector.load %arg0[%379, %c0_165, %c0_166] : memref<8x2x128xf32, #tpu.memory_space<vmem>>, vector<1x2x128xf32>
    %381 = vector.shape_cast %380 : vector<1x2x128xf32> to vector<2x128xf32>
    %c0_167 = arith.constant 0 : index
    %c0_168 = arith.constant 0 : index
    %382 = vector.load %arg6[%c0_167, %c0_168] : memref<2x32xf32, #tpu.memory_space<vmem>>, vector<2x32xf32>
    %383 = arith.truncf %382 : vector<2x32xf32> to vector<2x32xbf16>
    %cst_169 = arith.constant dense<0.000000e+00> : vector<2x128xf32>
    %384 = tpu.matmul %383, %7, %cst_169 {dimension_numbers = #tpu.dot_dimension_numbers<[1], [0], [0], [1], [0, 0, 1, 1], [], []>} : vector<2x32xbf16>, vector<32x128xbf16>, vector<2x128xf32> -> vector<2x128xf32>
    %385 = arith.addf %381, %384 : vector<2x128xf32>
    %386 = vector.extract_strided_slice %385 {offsets = [0, 0], sizes = [2, 32], strides = [1, 1]} : vector<2x128xf32> to vector<2x32xf32>
    %387 = arith.negf %386 : vector<2x32xf32>
    %388 = math.exp %387 : vector<2x32xf32>
    %cst_170 = arith.constant 1.000000e+00 : f32
    %389 = vector.broadcast %cst_170 : f32 to vector<2x32xf32>
    %390 = arith.addf %389, %388 : vector<2x32xf32>
    %391 = arith.divf %389, %390 : vector<2x32xf32>
    %392 = vector.extract_strided_slice %385 {offsets = [0, 32], sizes = [2, 32], strides = [1, 1]} : vector<2x128xf32> to vector<2x32xf32>
    %393 = arith.negf %392 : vector<2x32xf32>
    %394 = math.exp %393 : vector<2x32xf32>
    %cst_171 = arith.constant 1.000000e+00 : f32
    %395 = vector.broadcast %cst_171 : f32 to vector<2x32xf32>
    %396 = arith.addf %395, %394 : vector<2x32xf32>
    %397 = arith.divf %395, %396 : vector<2x32xf32>
    %398 = vector.extract_strided_slice %385 {offsets = [0, 64], sizes = [2, 32], strides = [1, 1]} : vector<2x128xf32> to vector<2x32xf32>
    %399 = math.tanh %398 : vector<2x32xf32>
    %400 = vector.extract_strided_slice %385 {offsets = [0, 96], sizes = [2, 32], strides = [1, 1]} : vector<2x128xf32> to vector<2x32xf32>
    %401 = arith.negf %400 : vector<2x32xf32>
    %402 = math.exp %401 : vector<2x32xf32>
    %cst_172 = arith.constant 1.000000e+00 : f32
    %403 = vector.broadcast %cst_172 : f32 to vector<2x32xf32>
    %404 = arith.addf %403, %402 : vector<2x32xf32>
    %405 = arith.divf %403, %404 : vector<2x32xf32>
    %c0_173 = arith.constant 0 : index
    %c0_174 = arith.constant 0 : index
    %406 = vector.load %arg7[%c0_173, %c0_174] : memref<2x32xf32, #tpu.memory_space<vmem>>, vector<2x32xf32>
    %407 = arith.mulf %397, %406 : vector<2x32xf32>
    %408 = arith.mulf %391, %399 : vector<2x32xf32>
    %409 = arith.addf %407, %408 : vector<2x32xf32>
    %410 = math.tanh %409 : vector<2x32xf32>
    %411 = arith.mulf %405, %410 : vector<2x32xf32>
    %c0_175 = arith.constant 0 : index
    %c0_176 = arith.constant 0 : index
    %412 = vector.load %arg7[%c0_175, %c0_176] : memref<2x32xf32, #tpu.memory_space<vmem>>, vector<2x32xf32>
    tpu.vector_store %arg7[%c0_175, %c0_176], %409 {strides = array<i32>} : memref<2x32xf32, #tpu.memory_space<vmem>>, vector<2x32xf32>,
    %c0_177 = arith.constant 0 : index
    %c0_178 = arith.constant 0 : index
    %413 = vector.load %arg6[%c0_177, %c0_178] : memref<2x32xf32, #tpu.memory_space<vmem>>, vector<2x32xf32>
    tpu.vector_store %arg6[%c0_177, %c0_178], %411 {strides = array<i32>} : memref<2x32xf32, #tpu.memory_space<vmem>>, vector<2x32xf32>,
    %414 = vector.broadcast %c7_i32 : i32 to vector<2x1xi32>
    %415 = arith.cmpi slt, %414, %6 : vector<2x1xi32>
    %cst_179 = arith.constant 0.000000e+00 : f32
    %416 = vector.shape_cast %415 : vector<2x1xi1> to vector<2x1xi1>
    %417 = vector.broadcast %416 : vector<2x1xi1> to vector<2x32xi1>
    %418 = vector.broadcast %cst_179 : f32 to vector<2x32xf32>
    %419 = arith.select %417, %411, %418 : vector<2x32xi1>, vector<2x32xf32>
    %420 = arith.index_cast %c7_i32 : i32 to index
    %c0_180 = arith.constant 0 : index
    %c0_181 = arith.constant 0 : index
    %421 = vector.load %arg9[%420, %c0_180, %c0_181] : memref<8x2x32xf32, #tpu.memory_space<vmem>>, vector<1x2x32xf32>
    %422 = vector.shape_cast %421 : vector<1x2x32xf32> to vector<2x32xf32>
    %423 = vector.shape_cast %419 : vector<2x32xf32> to vector<1x2x32xf32>
    tpu.vector_store %arg9[%420, %c0_180, %c0_181], %423 {strides = array<i32>} : memref<8x2x32xf32, #tpu.memory_space<vmem>>, vector<1x2x32xf32>,
    %c1_i32_182 = arith.constant 1 : i32
    %424 = arith.addi %c7_i32, %c1_i32_182 : i32
    %425 = vector.broadcast %424 : i32 to vector<2x1xi32>
    %426 = arith.cmpi eq, %6, %425 : vector<2x1xi32>
    %c0_183 = arith.constant 0 : index
    %c0_184 = arith.constant 0 : index
    %427 = vector.load %arg8[%c0_183, %c0_184] : memref<2x32xf32, #tpu.memory_space<vmem>>, vector<2x32xf32>
    %428 = vector.shape_cast %426 : vector<2x1xi1> to vector<2x1xi1>
    %429 = vector.broadcast %428 : vector<2x1xi1> to vector<2x32xi1>
    %430 = arith.select %429, %411, %427 : vector<2x32xi1>, vector<2x32xf32>
    %c0_185 = arith.constant 0 : index
    %c0_186 = arith.constant 0 : index
    %431 = vector.load %arg8[%c0_185, %c0_186] : memref<2x32xf32, #tpu.memory_space<vmem>>, vector<2x32xf32>
    tpu.vector_store %arg8[%c0_185, %c0_186], %430 {strides = array<i32>} : memref<2x32xf32, #tpu.memory_space<vmem>>, vector<2x32xf32>,
    %c8_i32 = arith.constant 8 : i32
    %c0_187 = arith.constant 0 : index
    %c0_188 = arith.constant 0 : index
    %c0_189 = arith.constant 0 : index
    %432 = vector.load %arg9[%c0_187, %c0_188, %c0_189] : memref<8x2x32xf32, #tpu.memory_space<vmem>>, vector<8x2x32xf32>
    %c0_190 = arith.constant 0 : index
    %c0_191 = arith.constant 0 : index
    %433 = vector.load %arg8[%c0_190, %c0_191] : memref<2x32xf32, #tpu.memory_space<vmem>>, vector<2x32xf32>
    %c0_192 = arith.constant 0 : index
    %c0_193 = arith.constant 0 : index
    %434 = vector.load %arg2[%c0_192, %c0_193] : memref<1x32xf32, #tpu.memory_space<vmem>>, vector<1x32xf32>
    %435 = vector.broadcast %434 : vector<1x32xf32> to vector<2x32xf32>
    %436 = arith.mulf %433, %435 : vector<2x32xf32>
    %437 = vector.shape_cast %436 : vector<2x32xf32> to vector<1x2x32xf32>
    %438 = vector.broadcast %437 : vector<1x2x32xf32> to vector<8x2x32xf32>
    %439 = arith.mulf %432, %438 : vector<8x2x32xf32>
    %cst_194 = arith.constant dense<0.000000e+00> : vector<8x2xf32>
    %440 = vector.multi_reduction <add>, %439, %cst_194 [2] : vector<8x2x32xf32> to vector<8x2xf32>
    %441 = tpu.transpose %440, [1, 0] : vector<8x2xf32> -> vector<2x8xf32>
    %442 = tpu.iota {dimensions = array<i32: 1>} : vector<2x8xi32>
    %443 = vector.broadcast %6 : vector<2x1xi32> to vector<2x8xi32>
    %444 = arith.cmpi slt, %442, %443 : vector<2x8xi32>
    %cst_195 = arith.constant -1.000000e+09 : f32
    %445 = vector.broadcast %cst_195 : f32 to vector<2x8xf32>
    %446 = arith.select %444, %441, %445 : vector<2x8xi1>, vector<2x8xf32>
    %cst_196 = arith.constant dense<0xFF800000> : vector<2xf32>
    %447 = vector.multi_reduction <maximumf>, %446, %cst_196 [1] : vector<2x8xf32> to vector<2xf32>
    %448 = vector.shape_cast %447 : vector<2xf32> to vector<2x1xf32>
    %449 = vector.broadcast %448 : vector<2x1xf32> to vector<2x8xf32>
    %450 = arith.subf %446, %449 : vector<2x8xf32>
    %451 = math.exp %450 : vector<2x8xf32>
    %cst_197 = arith.constant dense<0.000000e+00> : vector<2xf32>
    %452 = vector.multi_reduction <add>, %451, %cst_197 [1] : vector<2x8xf32> to vector<2xf32>
    %453 = vector.shape_cast %452 : vector<2xf32> to vector<2x1xf32>
    %454 = tpu.reciprocal %453 {approx = true} : vector<2x1xf32> -> vector<2x1xf32>
    %455 = vector.broadcast %454 : vector<2x1xf32> to vector<2x8xf32>
    %456 = arith.mulf %451, %455 : vector<2x8xf32>
    %c0_198 = arith.constant 0 : index
    %c0_199 = arith.constant 0 : index
    %457 = vector.load %arg5[%c0_198, %c0_199] : memref<2x8xf32, #tpu.memory_space<vmem>>, vector<2x8xf32>
    tpu.vector_store %arg5[%c0_198, %c0_199], %456 {strides = array<i32>} : memref<2x8xf32, #tpu.memory_space<vmem>>, vector<2x8xf32>,
    %458 = tpu.transpose %456, [1, 0] : vector<2x8xf32> -> vector<8x2xf32>
    %459 = vector.shape_cast %458 : vector<8x2xf32> to vector<8x2x1xf32>
    %460 = vector.broadcast %459 : vector<8x2x1xf32> to vector<8x2x32xf32>
    %461 = arith.mulf %432, %460 : vector<8x2x32xf32>
    %cst_200 = arith.constant dense<0.000000e+00> : vector<2x32xf32>
    %462 = vector.multi_reduction <add>, %461, %cst_200 [0] : vector<8x2x32xf32> to vector<2x32xf32>
    %c0_201 = arith.constant 0 : index
    %c0_202 = arith.constant 0 : index
    %463 = vector.load %arg4[%c0_201, %c0_202] : memref<2x32xf32, #tpu.memory_space<vmem>>, vector<2x32xf32>
    tpu.vector_store %arg4[%c0_201, %c0_202], %462 {strides = array<i32>} : memref<2x32xf32, #tpu.memory_space<vmem>>, vector<2x32xf32>,
    return
  }
}

</mosaic_0001>

<llo_original>
// kernel: lstm_forward.2
$region0: #{lstm_forward.2}
  #allocation0 [shape = 'u32[]', space=smem, size = 0x4, offset = 0x4, fixed_abs, tag = 'smem constant byte address 0x4 - core index']
  #allocation1 [shape = 'u32[72,128]{1,0:T(1,128)}', space=vmem, size = 0x9000, scoped, tag = 'internal scratch']
  %s0 = inlined_call_operand.vmem [shape: bf16[16,16], index: 0, kind: input, shape index: {}]
  %s1 = inlined_call_operand.vmem [shape: bf16[16,128], index: 1, kind: input, shape index: {}]
  %s2 = inlined_call_operand.vmem [shape: f32[1,128], index: 2, kind: input, shape index: {}]
  %s3 = inlined_call_operand.vmem [shape: f32[16,128], index: 3, kind: output, shape index: {}]
  %s4 = sld [smem:[#allocation0]]
  $region22: #{lstm_forward.2} parent=0
    _
  %s6 = ssub.s32 1, %s4
  %s7 = scalar_select 0, %s6, %s4
  // Predicated region
  $region2: #{lstm_forward.2} parent=0 // pred_check
    _
  $region3: #{lstm_forward.2} parent=0 // pred_check_branch
    %9 = sbr.rel (0) target = $region5
  $region4: #{lstm_forward.2} parent=0 // pred_region
    _
  $region5: #{lstm_forward.2} parent=0 // pred_fallthru
    _
  // Predicated region
  $region6: #{lstm_forward.2} parent=0 // pred_check
    _
  $region7: #{lstm_forward.2} parent=0 // pred_check_branch
    %11 = sbr.rel (0) target = $region9
  $region8: #{lstm_forward.2} parent=0 // pred_region
    _
  $region9: #{lstm_forward.2} parent=0 // pred_fallthru
    _
  // Predicated region
  $region10: #{lstm_forward.2} parent=0 // pred_check
    _
  $region11: #{lstm_forward.2} parent=0 // pred_check_branch
    %13 = sbr.rel (0) target = $region13
  $region12: #{lstm_forward.2} parent=0 // pred_region
    _
  $region13: #{lstm_forward.2} parent=0 // pred_fallthru
    _
  %v15 = vld [vmem:[%s0] sm:$0xf]
  %v16 = vld [vmem:[%s0 + $0x4] sm:$0xf]
  %v17 = vld [vmem:[%s1] sm:$0xf]
  %v18 = vld [vmem:[%s1 + $0x4] sm:$0xf]
  %v19 = vld [vmem:[%s2] sm:$0x1]
  %v21 = vperm.slane %v19, 0
  %v25 = vunpack.c.l.b16 %v15
  %v26 = vunpack.c.l.b16 %v16
  %v27 = vpack.c.b16 %v26, %v25
  %v30 = vunpack.c.l.b16 %v17
  %v31 = vunpack.c.l.b16 %v18
  %v32 = vpack.c.b16 %v31, %v30
  %vm34 = vcmask 130048
  %v36 = vsel %vm34, %v27, 0
  %38 = vmatpush.bf16.msra.mxu0 0
  %39 = vmatpush.bf16.msra.mxu0 0
  %40 = vmatpush.bf16.msra.mxu0 0
  %41 = vmatpush.bf16.msra.mxu0 0
  %42 = vmatpush.bf16.msra.mxu0 0
  %43 = vmatpush.bf16.msra.mxu0 0
  %44 = vmatpush.bf16.msra.mxu0 0
  %45 = vmatpush.bf16.msra.mxu0 %v32
  %46 = vmatmul.bf16.gmra.mxu0 %v36
  %v47 = vpop.f32.mrf.mxu0
  %v48 = vadd.f32 %v21, %v47
  %v49 = vpop.f32.mrf.mxu0
  %v50 = vadd.f32 %v21, %v49
  %51 = vdwg.mxu0
  %52 = vst [vmem:[%s3] sm:$0xff] %v48
  %53 = vst [vmem:[%s3 + $0x8] sm:$0xff] %v50
  // Predicated region
  $region14: #{lstm_forward.2} parent=0 // pred_check
    _
  $region15: #{lstm_forward.2} parent=0 // pred_check_branch
    %55 = sbr.rel (0) target = $region17
  $region16: #{lstm_forward.2} parent=0 // pred_region
    _
  $region17: #{lstm_forward.2} parent=0 // pred_fallthru
    _
  // Predicated region
  $region18: #{lstm_forward.2} parent=0 // pred_check
    _
  $region19: #{lstm_forward.2} parent=0 // pred_check_branch
    %57 = sbr.rel (0) target = $region21
  $region20: #{lstm_forward.2} parent=0 // pred_region
    _
  $region21: #{lstm_forward.2} parent=0 // pred_fallthru
    _

// kernel: lstm_forward.3
$region0: #{lstm_forward.3}
  #allocation0 [shape = 'u32[]', space=smem, size = 0x4, offset = 0x4, fixed_abs, tag = 'smem constant byte address 0x4 - core index']
  #allocation1 [shape = 'u32[72,128]{1,0:T(1,128)}', space=vmem, size = 0x9000, scoped, tag = 'internal scratch']
  #allocation2 [shape = 'f32[2,32]{1,0:T(2,128)}', space=vmem, size = 0x400, scoped, tag = 'scratch operand']
  #allocation3 [shape = 'f32[2,32]{1,0:T(2,128)}', space=vmem, size = 0x400, scoped, tag = 'scratch operand']
  #allocation4 [shape = 'f32[2,32]{1,0:T(2,128)}', space=vmem, size = 0x400, scoped, tag = 'scratch operand']
  #allocation5 [shape = 'f32[8,2,32]{2,1,0:T(2,128)}', space=vmem, size = 0x2000, scoped, tag = 'scratch operand']
  %s0 = inlined_call_operand.vmem [shape: f32[8,2,128], index: 0, kind: input, shape index: {}]
  %s1 = inlined_call_operand.vmem [shape: bf16[32,128], index: 1, kind: input, shape index: {}]
  %s2 = inlined_call_operand.vmem [shape: f32[1,32], index: 2, kind: input, shape index: {}]
  %s3 = inlined_call_operand.vmem [shape: s32[2,1], index: 3, kind: input, shape index: {}]
  %s4 = inlined_call_operand.hbm [shape: f32[2,32], index: 4, kind: output, shape index: {0}]
  %s5 = inlined_call_operand.hbm [shape: f32[2,8], index: 5, kind: output, shape index: {1}]
  %6 = xla_tuple %s4, %s5
  %s7 = sld [smem:[#allocation0]]
  $region34: #{lstm_forward.3} parent=0
    _
  %s9 = ssub.s32 1, %s7
  %s10 = scalar_select 0, %s9, %s7
  $region1: #{lstm_forward.3} parent=0
    #allocation6 [shape = 'u8[1024]{0}', space=vmem, size = 0x400, scoped, tag = 'output window, operand 0, single buffered']
    #allocation7 [shape = 's32[1]{0}', space=sflag, size = 0x4, scoped, tag = 'scoped memory for lstm_forward.3']
    #allocation8 [shape = 'u8[1024]{0}', space=vmem, size = 0x400, scoped, tag = 'output window, operand 1, single buffered']
    #allocation9 [shape = 's32[1]{0}', space=sflag, size = 0x4, scoped, tag = 'scoped memory for lstm_forward.3']
    %11 = vsyncpa [#allocation7], 0
    %12 = vsyncpa [#allocation9], 0
    // Predicated region
    $region2: #{lstm_forward.3} parent=1 // pred_check
      _
    $region3: #{lstm_forward.3} parent=1 // pred_check_branch
      %14 = sbr.rel (0) target = $region5
    $region4: #{lstm_forward.3} parent=1 // pred_region
      _
    $region5: #{lstm_forward.3} parent=1 // pred_fallthru
      _
    // Predicated region
    $region6: #{lstm_forward.3} parent=1 // pred_check
      _
    $region7: #{lstm_forward.3} parent=1 // pred_check_branch
      %16 = sbr.rel (0) target = $region9
    $region8: #{lstm_forward.3} parent=1 // pred_region
      _
    $region9: #{lstm_forward.3} parent=1 // pred_fallthru
      _
    // Predicated region
    $region10: #{lstm_forward.3} parent=1 // pred_check
      _
    $region11: #{lstm_forward.3} parent=1 // pred_check_branch
      %18 = sbr.rel (0) target = $region13
    $region12: #{lstm_forward.3} parent=1 // pred_region
      _
    $region13: #{lstm_forward.3} parent=1 // pred_fallthru
      _
    // Predicated region
    $region14: #{lstm_forward.3} parent=1 // pred_check
      _
    $region15: #{lstm_forward.3} parent=1 // pred_check_branch
      %20 = sbr.rel (0) target = $region17
    $region16: #{lstm_forward.3} parent=1 // pred_region
      _
    $region17: #{lstm_forward.3} parent=1 // pred_fallthru
      _
    %vm22 = vcmask 254976
    %23 = vst.msk [vmem:[#allocation2] sm:$0x3] %vm22, 0.0
    %24 = vst.msk [vmem:[#allocation3] sm:$0x3] %vm22, 0.0
    %25 = vst.msk [vmem:[#allocation4] sm:$0x3] %vm22, 0.0
    %v26 = vld [vmem:[%s3] sm:$0x3]
    %v27 = vld [vmem:[%s1] sm:$0xf]
    %v28 = vld [vmem:[%s1 + $0x4] sm:$0xf]
    %v29 = vld [vmem:[%s1 + $0x8] sm:$0xf]
    %v30 = vld [vmem:[%s1 + $0xc] sm:$0xf]
    %v31 = vld [vmem:[%s0] sm:$0x3]
    %v32 = vld [vmem:[#allocation2] sm:$0x3]
    %v33 = vpack.c.bf16 %v32, %v32
    %v38 = vunpack.c.l.b16 %v27
    %v39 = vunpack.c.l.b16 %v28
    %v40 = vunpack.c.l.b16 %v29
    %v41 = vunpack.c.l.b16 %v30
    %v42 = vpack.c.b16 %v39, %v38
    %v43 = vpack.c.b16 %v41, %v40
    %vm46 = vcmask 261120
    %v48 = vsel %vm46, %v33, 0
    %50 = vmatpush.bf16.msra.mxu0 0
    %51 = vmatpush.bf16.msra.mxu0 0
    %52 = vmatpush.bf16.msra.mxu0 0
    %53 = vmatpush.bf16.msra.mxu0 0
    %54 = vmatpush.bf16.msra.mxu0 0
    %55 = vmatpush.bf16.msra.mxu0 0
    %56 = vmatpush.bf16.msra.mxu0 %v43
    %57 = vmatpush.bf16.msra.mxu0 %v42
    %58 = vmatmul.bf16.gmra.mxu0 %v48
    %v59 = vpop.f32.mrf.mxu0
    %v60 = vadd.f32 0.0, %v59
    %v61 = vpop.f32.mrf.mxu0
    %62 = vdwg.mxu0
    %v63 = vadd.f32 %v31, %v60
    %v64 = vxor.u32 %v63, 2147483648
    %v65 = vmul.f32 %v64, 1.442695
    %v66 = vpow.pop %v65
    %v67 = vadd.f32 %v66, 1.0
    %v68 = vrcp.pop %v67
    %v69 = vmul.f32 %v67, %v68
    %v70 = vsub.f32 1.0, %v69
    %v71 = vmul.f32 %v68, %v70
    %v72 = vadd.f32 %v68, %v71
    %vm73 = vweird.f32 %v67
    %vm74 = vweird.f32 %v68
    %vm75 = vmor %vm73, %vm74
    %v76 = vsel %vm75, %v68, %v72
    %v77 = vand.u32 2147483647, %v67
    %vm78 = vcmp.eq.f32.partialorder %v77, 8.507059e+37
    %v79 = vand.u32 %v67, 2147483648
    %v80 = vor.u32 1.1754944e-38, %v79
    %v81 = vsel %vm78, %v80, %v76
    %v82 = vmul.f32 1.0, %v81
    %v83 = vtanh.pop %v63
    %v84 = vld [vmem:[#allocation3] sm:$0x3]
    %86 = vrot.lane.b32.xlu0 %v84, 32
    %v87 = vpop.permute.xlu0 %86
    %v89 = vmul.f32 %v82, %v87
    %91 = vrot.lane.b32.xlu0 %v83, 64
    %v92 = vpop.permute.xlu0 %91
    %v94 = vmul.f32 %v82, %v92
    %96 = vrot.lane.b32.xlu0 %v94, 32
    %v97 = vpop.permute.xlu0 %96
    %v99 = vadd.f32 %v89, %v97
    %v100 = vtanh.pop %v99
    %102 = vrot.lane.b32.xlu0 %v100, 64
    %v103 = vpop.permute.xlu0 %102
    %v105 = vmul.f32 %v82, %v103
    %107 = vrot.lane.b32.xlu0 %v99, 96
    %v108 = vpop.permute.xlu0 %107
    %110 = vst.msk [vmem:[#allocation3] sm:$0x3] %vm22, %v108
    %112 = vrot.lane.b32.xlu0 %v105, 32
    %v113 = vpop.permute.xlu0 %112
    %115 = vst.msk [vmem:[#allocation2] sm:$0x3] %vm22, %v113
    %vm116 = vcmp.gt.s32.totalorder %v26, 0
    %v117 = vsel %vm116, 1, 0
    %118 = vset.pattern.permute.xlu0 0
    %119 = vperm.xlu0 %118, %v117
    %v120 = vpop.permute.xlu0 %119
    %vm121 = vcmp.eq.s32.totalorder %v120, 1
    %v122 = vsel %vm121, %v105, 0.0
    %124 = vrot.lane.b32.xlu0 %v122, 32
    %v125 = vpop.permute.xlu0 %124
    %127 = vst.msk [vmem:[#allocation5] sm:$0x3] %vm22, %v125
    %vm128 = vcmp.eq.s32.totalorder %v26, 1
    %v129 = vld [vmem:[#allocation4] sm:$0x3]
    %v130 = vsel %vm128, 1, 0
    %131 = vset.pattern.permute.xlu0 0
    %132 = vperm.xlu0 %131, %v130
    %v133 = vpop.permute.xlu0 %132
    %vm134 = vcmp.eq.s32.totalorder %v133, 1
    %136 = vrot.lane.b32.xlu0 %v129, 96
    %v137 = vpop.permute.xlu0 %136
    %v139 = vsel %vm134, %v105, %v137
    %141 = vrot.lane.b32.xlu0 %v139, 32
    %v142 = vpop.permute.xlu0 %141
    %144 = vst.msk [vmem:[#allocation4] sm:$0x3] %vm22, %v142
    %s145 = scalar_lea.vmem %s0, 2
    %v146 = vld [vmem:[%s145] sm:$0x3]
    %v147 = vld [vmem:[#allocation2] sm:$0x3]
    %v148 = vpack.c.bf16 %v147, %v147
    %v150 = vsel %vm46, %v148, 0
    %152 = vmatpush.bf16.msra.mxu0 0
    %153 = vmatpush.bf16.msra.mxu0 0
    %154 = vmatpush.bf16.msra.mxu0 0
    %155 = vmatpush.bf16.msra.mxu0 0
    %156 = vmatpush.bf16.msra.mxu0 0
    %157 = vmatpush.bf16.msra.mxu0 0
    %158 = vmatpush.bf16.msra.mxu0 %v43
    %159 = vmatpush.bf16.msra.mxu0 %v42
    %160 = vmatmul.bf16.gmra.mxu0 %v150
    %v161 = vpop.f32.mrf.mxu0
    %v162 = vadd.f32 0.0, %v161
    %v163 = vpop.f32.mrf.mxu0
    %164 = vdwg.mxu0
    %v165 = vadd.f32 %v146, %v162
    %v166 = vxor.u32 %v165, 2147483648
    %v167 = vmul.f32 %v166, 1.442695
    %v168 = vpow.pop %v167
    %v169 = vadd.f32 %v168, 1.0
    %v170 = vrcp.pop %v169
    %v171 = vmul.f32 %v169, %v170
    %v172 = vsub.f32 1.0, %v171
    %v173 = vmul.f32 %v170, %v172
    %v174 = vadd.f32 %v170, %v173
    %vm175 = vweird.f32 %v169
    %vm176 = vweird.f32 %v170
    %vm177 = vmor %vm175, %vm176
    %v178 = vsel %vm177, %v170, %v174
    %v179 = vand.u32 2147483647, %v169
    %vm180 = vcmp.eq.f32.partialorder %v179, 8.507059e+37
    %v181 = vand.u32 %v169, 2147483648
    %v182 = vor.u32 1.1754944e-38, %v181
    %v183 = vsel %vm180, %v182, %v178
    %v184 = vmul.f32 1.0, %v183
    %v185 = vtanh.pop %v165
    %v186 = vld [vmem:[#allocation3] sm:$0x3]
    %188 = vrot.lane.b32.xlu0 %v186, 32
    %v189 = vpop.permute.xlu0 %188
    %v191 = vmul.f32 %v184, %v189
    %193 = vrot.lane.b32.xlu0 %v185, 64
    %v194 = vpop.permute.xlu0 %193
    %v196 = vmul.f32 %v184, %v194
    %198 = vrot.lane.b32.xlu0 %v196, 32
    %v199 = vpop.permute.xlu0 %198
    %v201 = vadd.f32 %v191, %v199
    %v202 = vtanh.pop %v201
    %204 = vrot.lane.b32.xlu0 %v202, 64
    %v205 = vpop.permute.xlu0 %204
    %v207 = vmul.f32 %v184, %v205
    %209 = vrot.lane.b32.xlu0 %v201, 96
    %v210 = vpop.permute.xlu0 %209
    %212 = vst.msk [vmem:[#allocation3] sm:$0x3] %vm22, %v210
    %214 = vrot.lane.b32.xlu0 %v207, 32
    %v215 = vpop.permute.xlu0 %214
    %217 = vst.msk [vmem:[#allocation2] sm:$0x3] %vm22, %v215
    %vm218 = vcmp.gt.s32.totalorder %v26, 1
    %v219 = vsel %vm218, 1, 0
    %220 = vset.pattern.permute.xlu0 0
    %221 = vperm.xlu0 %220, %v219
    %v222 = vpop.permute.xlu0 %221
    %vm223 = vcmp.eq.s32.totalorder %v222, 1
    %v224 = vsel %vm223, %v207, 0.0
    %226 = vrot.lane.b32.xlu0 %v224, 32
    %v227 = vpop.permute.xlu0 %226
    %s229 = scalar_lea.vmem [#allocation5], 2
    %230 = vst.msk [vmem:[%s229] sm:$0x3] %vm22, %v227
    %vm231 = vcmp.eq.s32.totalorder %v26, 2
    %v232 = vld [vmem:[#allocation4] sm:$0x3]
    %v233 = vsel %vm231, 1, 0
    %234 = vset.pattern.permute.xlu0 0
    %235 = vperm.xlu0 %234, %v233
    %v236 = vpop.permute.xlu0 %235
    %vm237 = vcmp.eq.s32.totalorder %v236, 1
    %239 = vrot.lane.b32.xlu0 %v232, 96
    %v240 = vpop.permute.xlu0 %239
    %v242 = vsel %vm237, %v207, %v240
    %244 = vrot.lane.b32.xlu0 %v242, 32
    %v245 = vpop.permute.xlu0 %244
    %247 = vst.msk [vmem:[#allocation4] sm:$0x3] %vm22, %v245
    %s248 = scalar_lea.vmem %s0, 4
    %v249 = vld [vmem:[%s248] sm:$0x3]
    %v250 = vld [vmem:[#allocation2] sm:$0x3]
    %v251 = vpack.c.bf16 %v250, %v250
    %v253 = vsel %vm46, %v251, 0
    %255 = vmatpush.bf16.msra.mxu0 0
    %256 = vmatpush.bf16.msra.mxu0 0
    %257 = vmatpush.bf16.msra.mxu0 0
    %258 = vmatpush.bf16.msra.mxu0 0
    %259 = vmatpush.bf16.msra.mxu0 0
    %260 = vmatpush.bf16.msra.mxu0 0
    %261 = vmatpush.bf16.msra.mxu0 %v43
    %262 = vmatpush.bf16.msra.mxu0 %v42
    %263 = vmatmul.bf16.gmra.mxu0 %v253
    %v264 = vpop.f32.mrf.mxu0
    %v265 = vadd.f32 0.0, %v264
    %v266 = vpop.f32.mrf.mxu0
    %267 = vdwg.mxu0
    %v268 = vadd.f32 %v249, %v265
    %v269 = vxor.u32 %v268, 2147483648
    %v270 = vmul.f32 %v269, 1.442695
    %v271 = vpow.pop %v270
    %v272 = vadd.f32 %v271, 1.0
    %v273 = vrcp.pop %v272
    %v274 = vmul.f32 %v272, %v273
    %v275 = vsub.f32 1.0, %v274
    %v276 = vmul.f32 %v273, %v275
    %v277 = vadd.f32 %v273, %v276
    %vm278 = vweird.f32 %v272
    %vm279 = vweird.f32 %v273
    %vm280 = vmor %vm278, %vm279
    %v281 = vsel %vm280, %v273, %v277
    %v282 = vand.u32 2147483647, %v272
    %vm283 = vcmp.eq.f32.partialorder %v282, 8.507059e+37
    %v284 = vand.u32 %v272, 2147483648
    %v285 = vor.u32 1.1754944e-38, %v284
    %v286 = vsel %vm283, %v285, %v281
    %v287 = vmul.f32 1.0, %v286
    %v288 = vtanh.pop %v268
    %v289 = vld [vmem:[#allocation3] sm:$0x3]
    %291 = vrot.lane.b32.xlu0 %v289, 32
    %v292 = vpop.permute.xlu0 %291
    %v294 = vmul.f32 %v287, %v292
    %296 = vrot.lane.b32.xlu0 %v288, 64
    %v297 = vpop.permute.xlu0 %296
    %v299 = vmul.f32 %v287, %v297
    %301 = vrot.lane.b32.xlu0 %v299, 32
    %v302 = vpop.permute.xlu0 %301
    %v304 = vadd.f32 %v294, %v302
    %v305 = vtanh.pop %v304
    %307 = vrot.lane.b32.xlu0 %v305, 64
    %v308 = vpop.permute.xlu0 %307
    %v310 = vmul.f32 %v287, %v308
    %312 = vrot.lane.b32.xlu0 %v304, 96
    %v313 = vpop.permute.xlu0 %312
    %315 = vst.msk [vmem:[#allocation3] sm:$0x3] %vm22, %v313
    %317 = vrot.lane.b32.xlu0 %v310, 32
    %v318 = vpop.permute.xlu0 %317
    %320 = vst.msk [vmem:[#allocation2] sm:$0x3] %vm22, %v318
    %vm321 = vcmp.gt.s32.totalorder %v26, 2
    %v322 = vsel %vm321, 1, 0
    %323 = vset.pattern.permute.xlu0 0
    %324 = vperm.xlu0 %323, %v322
    %v325 = vpop.permute.xlu0 %324
    %vm326 = vcmp.eq.s32.totalorder %v325, 1
    %v327 = vsel %vm326, %v310, 0.0
    %329 = vrot.lane.b32.xlu0 %v327, 32
    %v330 = vpop.permute.xlu0 %329
    %s332 = scalar_lea.vmem [#allocation5], 4
    %333 = vst.msk [vmem:[%s332] sm:$0x3] %vm22, %v330
    %vm334 = vcmp.eq.s32.totalorder %v26, 3
    %v335 = vld [vmem:[#allocation4] sm:$0x3]
    %v336 = vsel %vm334, 1, 0
    %337 = vset.pattern.permute.xlu0 0
    %338 = vperm.xlu0 %337, %v336
    %v339 = vpop.permute.xlu0 %338
    %vm340 = vcmp.eq.s32.totalorder %v339, 1
    %342 = vrot.lane.b32.xlu0 %v335, 96
    %v343 = vpop.permute.xlu0 %342
    %v345 = vsel %vm340, %v310, %v343
    %347 = vrot.lane.b32.xlu0 %v345, 32
    %v348 = vpop.permute.xlu0 %347
    %350 = vst.msk [vmem:[#allocation4] sm:$0x3] %vm22, %v348
    %s351 = scalar_lea.vmem %s0, 6
    %v352 = vld [vmem:[%s351] sm:$0x3]
    %v353 = vld [vmem:[#allocation2] sm:$0x3]
    %v354 = vpack.c.bf16 %v353, %v353
    %v356 = vsel %vm46, %v354, 0
    %358 = vmatpush.bf16.msra.mxu0 0
    %359 = vmatpush.bf16.msra.mxu0 0
    %360 = vmatpush.bf16.msra.mxu0 0
    %361 = vmatpush.bf16.msra.mxu0 0
    %362 = vmatpush.bf16.msra.mxu0 0
    %363 = vmatpush.bf16.msra.mxu0 0
    %364 = vmatpush.bf16.msra.mxu0 %v43
    %365 = vmatpush.bf16.msra.mxu0 %v42
    %366 = vmatmul.bf16.gmra.mxu0 %v356
    %v367 = vpop.f32.mrf.mxu0
    %v368 = vadd.f32 0.0, %v367
    %v369 = vpop.f32.mrf.mxu0
    %370 = vdwg.mxu0
    %v371 = vadd.f32 %v352, %v368
    %v372 = vxor.u32 %v371, 2147483648
    %v373 = vmul.f32 %v372, 1.442695
    %v374 = vpow.pop %v373
    %v375 = vadd.f32 %v374, 1.0
    %v376 = vrcp.pop %v375
    %v377 = vmul.f32 %v375, %v376
    %v378 = vsub.f32 1.0, %v377
    %v379 = vmul.f32 %v376, %v378
    %v380 = vadd.f32 %v376, %v379
    %vm381 = vweird.f32 %v375
    %vm382 = vweird.f32 %v376
    %vm383 = vmor %vm381, %vm382
    %v384 = vsel %vm383, %v376, %v380
    %v385 = vand.u32 2147483647, %v375
    %vm386 = vcmp.eq.f32.partialorder %v385, 8.507059e+37
    %v387 = vand.u32 %v375, 2147483648
    %v388 = vor.u32 1.1754944e-38, %v387
    %v389 = vsel %vm386, %v388, %v384
    %v390 = vmul.f32 1.0, %v389
    %v391 = vtanh.pop %v371
    %v392 = vld [vmem:[#allocation3] sm:$0x3]
    %394 = vrot.lane.b32.xlu0 %v392, 32
    %v395 = vpop.permute.xlu0 %394
    %v397 = vmul.f32 %v390, %v395
    %399 = vrot.lane.b32.xlu0 %v391, 64
    %v400 = vpop.permute.xlu0 %399
    %v402 = vmul.f32 %v390, %v400
    %404 = vrot.lane.b32.xlu0 %v402, 32
    %v405 = vpop.permute.xlu0 %404
    %v407 = vadd.f32 %v397, %v405
    %v408 = vtanh.pop %v407
    %410 = vrot.lane.b32.xlu0 %v408, 64
    %v411 = vpop.permute.xlu0 %410
    %v413 = vmul.f32 %v390, %v411
    %415 = vrot.lane.b32.xlu0 %v407, 96
    %v416 = vpop.permute.xlu0 %415
    %418 = vst.msk [vmem:[#allocation3] sm:$0x3] %vm22, %v416
    %420 = vrot.lane.b32.xlu0 %v413, 32
    %v421 = vpop.permute.xlu0 %420
    %423 = vst.msk [vmem:[#allocation2] sm:$0x3] %vm22, %v421
    %vm424 = vcmp.gt.s32.totalorder %v26, 3
    %v425 = vsel %vm424, 1, 0
    %426 = vset.pattern.permute.xlu0 0
    %427 = vperm.xlu0 %426, %v425
    %v428 = vpop.permute.xlu0 %427
    %vm429 = vcmp.eq.s32.totalorder %v428, 1
    %v430 = vsel %vm429, %v413, 0.0
    %432 = vrot.lane.b32.xlu0 %v430, 32
    %v433 = vpop.permute.xlu0 %432
    %s435 = scalar_lea.vmem [#allocation5], 6
    %436 = vst.msk [vmem:[%s435] sm:$0x3] %vm22, %v433
    %vm437 = vcmp.eq.s32.totalorder %v26, 4
    %v438 = vld [vmem:[#allocation4] sm:$0x3]
    %v439 = vsel %vm437, 1, 0
    %440 = vset.pattern.permute.xlu0 0
    %441 = vperm.xlu0 %440, %v439
    %v442 = vpop.permute.xlu0 %441
    %vm443 = vcmp.eq.s32.totalorder %v442, 1
    %445 = vrot.lane.b32.xlu0 %v438, 96
    %v446 = vpop.permute.xlu0 %445
    %v448 = vsel %vm443, %v413, %v446
    %450 = vrot.lane.b32.xlu0 %v448, 32
    %v451 = vpop.permute.xlu0 %450
    %453 = vst.msk [vmem:[#allocation4] sm:$0x3] %vm22, %v451
    %s454 = scalar_lea.vmem %s0, 8
    %v455 = vld [vmem:[%s454] sm:$0x3]
    %v456 = vld [vmem:[#allocation2] sm:$0x3]
    %v457 = vpack.c.bf16 %v456, %v456
    %v459 = vsel %vm46, %v457, 0
    %461 = vmatpush.bf16.msra.mxu0 0
    %462 = vmatpush.bf16.msra.mxu0 0
    %463 = vmatpush.bf16.msra.mxu0 0
    %464 = vmatpush.bf16.msra.mxu0 0
    %465 = vmatpush.bf16.msra.mxu0 0
    %466 = vmatpush.bf16.msra.mxu0 0
    %467 = vmatpush.bf16.msra.mxu0 %v43
    %468 = vmatpush.bf16.msra.mxu0 %v42
    %469 = vmatmul.bf16.gmra.mxu0 %v459
    %v470 = vpop.f32.mrf.mxu0
    %v471 = vadd.f32 0.0, %v470
    %v472 = vpop.f32.mrf.mxu0
    %473 = vdwg.mxu0
    %v474 = vadd.f32 %v455, %v471
    %v475 = vxor.u32 %v474, 2147483648
    %v476 = vmul.f32 %v475, 1.442695
    %v477 = vpow.pop %v476
    %v478 = vadd.f32 %v477, 1.0
    %v479 = vrcp.pop %v478
    %v480 = vmul.f32 %v478, %v479
    %v481 = vsub.f32 1.0, %v480
    %v482 = vmul.f32 %v479, %v481
    %v483 = vadd.f32 %v479, %v482
    %vm484 = vweird.f32 %v478
    %vm485 = vweird.f32 %v479
    %vm486 = vmor %vm484, %vm485
    %v487 = vsel %vm486, %v479, %v483
    %v488 = vand.u32 2147483647, %v478
    %vm489 = vcmp.eq.f32.partialorder %v488, 8.507059e+37
    %v490 = vand.u32 %v478, 2147483648
    %v491 = vor.u32 1.1754944e-38, %v490
    %v492 = vsel %vm489, %v491, %v487
    %v493 = vmul.f32 1.0, %v492
    %v494 = vtanh.pop %v474
    %v495 = vld [vmem:[#allocation3] sm:$0x3]
    %497 = vrot.lane.b32.xlu0 %v495, 32
    %v498 = vpop.permute.xlu0 %497
    %v500 = vmul.f32 %v493, %v498
    %502 = vrot.lane.b32.xlu0 %v494, 64
    %v503 = vpop.permute.xlu0 %502
    %v505 = vmul.f32 %v493, %v503
    %507 = vrot.lane.b32.xlu0 %v505, 32
    %v508 = vpop.permute.xlu0 %507
    %v510 = vadd.f32 %v500, %v508
    %v511 = vtanh.pop %v510
    %513 = vrot.lane.b32.xlu0 %v511, 64
    %v514 = vpop.permute.xlu0 %513
    %v516 = vmul.f32 %v493, %v514
    %518 = vrot.lane.b32.xlu0 %v510, 96
    %v519 = vpop.permute.xlu0 %518
    %521 = vst.msk [vmem:[#allocation3] sm:$0x3] %vm22, %v519
    %523 = vrot.lane.b32.xlu0 %v516, 32
    %v524 = vpop.permute.xlu0 %523
    %526 = vst.msk [vmem:[#allocation2] sm:$0x3] %vm22, %v524
    %vm527 = vcmp.gt.s32.totalorder %v26, 4
    %v528 = vsel %vm527, 1, 0
    %529 = vset.pattern.permute.xlu0 0
    %530 = vperm.xlu0 %529, %v528
    %v531 = vpop.permute.xlu0 %530
    %vm532 = vcmp.eq.s32.totalorder %v531, 1
    %v533 = vsel %vm532, %v516, 0.0
    %535 = vrot.lane.b32.xlu0 %v533, 32
    %v536 = vpop.permute.xlu0 %535
    %s538 = scalar_lea.vmem [#allocation5], 8
    %539 = vst.msk [vmem:[%s538] sm:$0x3] %vm22, %v536
    %vm540 = vcmp.eq.s32.totalorder %v26, 5
    %v541 = vld [vmem:[#allocation4] sm:$0x3]
    %v542 = vsel %vm540, 1, 0
    %543 = vset.pattern.permute.xlu0 0
    %544 = vperm.xlu0 %543, %v542
    %v545 = vpop.permute.xlu0 %544
    %vm546 = vcmp.eq.s32.totalorder %v545, 1
    %548 = vrot.lane.b32.xlu0 %v541, 96
    %v549 = vpop.permute.xlu0 %548
    %v551 = vsel %vm546, %v516, %v549
    %553 = vrot.lane.b32.xlu0 %v551, 32
    %v554 = vpop.permute.xlu0 %553
    %556 = vst.msk [vmem:[#allocation4] sm:$0x3] %vm22, %v554
    %s557 = scalar_lea.vmem %s0, 10
    %v558 = vld [vmem:[%s557] sm:$0x3]
    %v559 = vld [vmem:[#allocation2] sm:$0x3]
    %v560 = vpack.c.bf16 %v559, %v559
    %v562 = vsel %vm46, %v560, 0
    %564 = vmatpush.bf16.msra.mxu0 0
    %565 = vmatpush.bf16.msra.mxu0 0
    %566 = vmatpush.bf16.msra.mxu0 0
    %567 = vmatpush.bf16.msra.mxu0 0
    %568 = vmatpush.bf16.msra.mxu0 0
    %569 = vmatpush.bf16.msra.mxu0 0
    %570 = vmatpush.bf16.msra.mxu0 %v43
    %571 = vmatpush.bf16.msra.mxu0 %v42
    %572 = vmatmul.bf16.gmra.mxu0 %v562
    %v573 = vpop.f32.mrf.mxu0
    %v574 = vadd.f32 0.0, %v573
    %v575 = vpop.f32.mrf.mxu0
    %576 = vdwg.mxu0
    %v577 = vadd.f32 %v558, %v574
    %v578 = vxor.u32 %v577, 2147483648
    %v579 = vmul.f32 %v578, 1.442695
    %v580 = vpow.pop %v579
    %v581 = vadd.f32 %v580, 1.0
    %v582 = vrcp.pop %v581
    %v583 = vmul.f32 %v581, %v582
    %v584 = vsub.f32 1.0, %v583
    %v585 = vmul.f32 %v582, %v584
    %v586 = vadd.f32 %v582, %v585
    %vm587 = vweird.f32 %v581
    %vm588 = vweird.f32 %v582
    %vm589 = vmor %vm587, %vm588
    %v590 = vsel %vm589, %v582, %v586
    %v591 = vand.u32 2147483647, %v581
    %vm592 = vcmp.eq.f32.partialorder %v591, 8.507059e+37
    %v593 = vand.u32 %v581, 2147483648
    %v594 = vor.u32 1.1754944e-38, %v593
    %v595 = vsel %vm592, %v594, %v590
    %v596 = vmul.f32 1.0, %v595
    %v597 = vtanh.pop %v577
    %v598 = vld [vmem:[#allocation3] sm:$0x3]
    %600 = vrot.lane.b32.xlu0 %v598, 32
    %v601 = vpop.permute.xlu0 %600
    %v603 = vmul.f32 %v596, %v601
    %605 = vrot.lane.b32.xlu0 %v597, 64
    %v606 = vpop.permute.xlu0 %605
    %v608 = vmul.f32 %v596, %v606
    %610 = vrot.lane.b32.xlu0 %v608, 32
    %v611 = vpop.permute.xlu0 %610
    %v613 = vadd.f32 %v603, %v611
    %v614 = vtanh.pop %v613
    %616 = vrot.lane.b32.xlu0 %v614, 64
    %v617 = vpop.permute.xlu0 %616
    %v619 = vmul.f32 %v596, %v617
    %621 = vrot.lane.b32.xlu0 %v613, 96
    %v622 = vpop.permute.xlu0 %621
    %624 = vst.msk [vmem:[#allocation3] sm:$0x3] %vm22, %v622
    %626 = vrot.lane.b32.xlu0 %v619, 32
    %v627 = vpop.permute.xlu0 %626
    %629 = vst.msk [vmem:[#allocation2] sm:$0x3] %vm22, %v627
    %vm630 = vcmp.gt.s32.totalorder %v26, 5
    %v631 = vsel %vm630, 1, 0
    %632 = vset.pattern.permute.xlu0 0
    %633 = vperm.xlu0 %632, %v631
    %v634 = vpop.permute.xlu0 %633
    %vm635 = vcmp.eq.s32.totalorder %v634, 1
    %v636 = vsel %vm635, %v619, 0.0
    %638 = vrot.lane.b32.xlu0 %v636, 32
    %v639 = vpop.permute.xlu0 %638
    %s641 = scalar_lea.vmem [#allocation5], 10
    %642 = vst.msk [vmem:[%s641] sm:$0x3] %vm22, %v639
    %vm643 = vcmp.eq.s32.totalorder %v26, 6
    %v644 = vld [vmem:[#allocation4] sm:$0x3]
    %v645 = vsel %vm643, 1, 0
    %646 = vset.pattern.permute.xlu0 0
    %647 = vperm.xlu0 %646, %v645
    %v648 = vpop.permute.xlu0 %647
    %vm649 = vcmp.eq.s32.totalorder %v648, 1
    %651 = vrot.lane.b32.xlu0 %v644, 96
    %v652 = vpop.permute.xlu0 %651
    %v654 = vsel %vm649, %v619, %v652
    %656 = vrot.lane.b32.xlu0 %v654, 32
    %v657 = vpop.permute.xlu0 %656
    %659 = vst.msk [vmem:[#allocation4] sm:$0x3] %vm22, %v657
    %s660 = scalar_lea.vmem %s0, 12
    %v661 = vld [vmem:[%s660] sm:$0x3]
    %v662 = vld [vmem:[#allocation2] sm:$0x3]
    %v663 = vpack.c.bf16 %v662, %v662
    %v665 = vsel %vm46, %v663, 0
    %667 = vmatpush.bf16.msra.mxu0 0
    %668 = vmatpush.bf16.msra.mxu0 0
    %669 = vmatpush.bf16.msra.mxu0 0
    %670 = vmatpush.bf16.msra.mxu0 0
    %671 = vmatpush.bf16.msra.mxu0 0
    %672 = vmatpush.bf16.msra.mxu0 0
    %673 = vmatpush.bf16.msra.mxu0 %v43
    %674 = vmatpush.bf16.msra.mxu0 %v42
    %675 = vmatmul.bf16.gmra.mxu0 %v665
    %v676 = vpop.f32.mrf.mxu0
    %v677 = vadd.f32 0.0, %v676
    %v678 = vpop.f32.mrf.mxu0
    %679 = vdwg.mxu0
    %v680 = vadd.f32 %v661, %v677
    %v681 = vxor.u32 %v680, 2147483648
    %v682 = vmul.f32 %v681, 1.442695
    %v683 = vpow.pop %v682
    %v684 = vadd.f32 %v683, 1.0
    %v685 = vrcp.pop %v684
    %v686 = vmul.f32 %v684, %v685
    %v687 = vsub.f32 1.0, %v686
    %v688 = vmul.f32 %v685, %v687
    %v689 = vadd.f32 %v685, %v688
    %vm690 = vweird.f32 %v684
    %vm691 = vweird.f32 %v685
    %vm692 = vmor %vm690, %vm691
    %v693 = vsel %vm692, %v685, %v689
    %v694 = vand.u32 2147483647, %v684
    %vm695 = vcmp.eq.f32.partialorder %v694, 8.507059e+37
    %v696 = vand.u32 %v684, 2147483648
    %v697 = vor.u32 1.1754944e-38, %v696
    %v698 = vsel %vm695, %v697, %v693
    %v699 = vmul.f32 1.0, %v698
    %v700 = vtanh.pop %v680
    %v701 = vld [vmem:[#allocation3] sm:$0x3]
    %703 = vrot.lane.b32.xlu0 %v701, 32
    %v704 = vpop.permute.xlu0 %703
    %v706 = vmul.f32 %v699, %v704
    %708 = vrot.lane.b32.xlu0 %v700, 64
    %v709 = vpop.permute.xlu0 %708
    %v711 = vmul.f32 %v699, %v709
    %713 = vrot.lane.b32.xlu0 %v711, 32
    %v714 = vpop.permute.xlu0 %713
    %v716 = vadd.f32 %v706, %v714
    %v717 = vtanh.pop %v716
    %719 = vrot.lane.b32.xlu0 %v717, 64
    %v720 = vpop.permute.xlu0 %719
    %v722 = vmul.f32 %v699, %v720
    %724 = vrot.lane.b32.xlu0 %v716, 96
    %v725 = vpop.permute.xlu0 %724
    %727 = vst.msk [vmem:[#allocation3] sm:$0x3] %vm22, %v725
    %729 = vrot.lane.b32.xlu0 %v722, 32
    %v730 = vpop.permute.xlu0 %729
    %732 = vst.msk [vmem:[#allocation2] sm:$0x3] %vm22, %v730
    %vm733 = vcmp.gt.s32.totalorder %v26, 6
    %v734 = vsel %vm733, 1, 0
    %735 = vset.pattern.permute.xlu0 0
    %736 = vperm.xlu0 %735, %v734
    %v737 = vpop.permute.xlu0 %736
    %vm738 = vcmp.eq.s32.totalorder %v737, 1
    %v739 = vsel %vm738, %v722, 0.0
    %741 = vrot.lane.b32.xlu0 %v739, 32
    %v742 = vpop.permute.xlu0 %741
    %s744 = scalar_lea.vmem [#allocation5], 12
    %745 = vst.msk [vmem:[%s744] sm:$0x3] %vm22, %v742
    %vm746 = vcmp.eq.s32.totalorder %v26, 7
    %v747 = vld [vmem:[#allocation4] sm:$0x3]
    %v748 = vsel %vm746, 1, 0
    %749 = vset.pattern.permute.xlu0 0
    %750 = vperm.xlu0 %749, %v748
    %v751 = vpop.permute.xlu0 %750
    %vm752 = vcmp.eq.s32.totalorder %v751, 1
    %754 = vrot.lane.b32.xlu0 %v747, 96
    %v755 = vpop.permute.xlu0 %754
    %v757 = vsel %vm752, %v722, %v755
    %759 = vrot.lane.b32.xlu0 %v757, 32
    %v760 = vpop.permute.xlu0 %759
    %762 = vst.msk [vmem:[#allocation4] sm:$0x3] %vm22, %v760
    %s763 = scalar_lea.vmem %s0, 14
    %v764 = vld [vmem:[%s763] sm:$0x3]
    %v765 = vld [vmem:[#allocation2] sm:$0x3]
    %v766 = vpack.c.bf16 %v765, %v765
    %v768 = vsel %vm46, %v766, 0
    %770 = vmatpush.bf16.msra.mxu0 0
    %771 = vmatpush.bf16.msra.mxu0 0
    %772 = vmatpush.bf16.msra.mxu0 0
    %773 = vmatpush.bf16.msra.mxu0 0
    %774 = vmatpush.bf16.msra.mxu0 0
    %775 = vmatpush.bf16.msra.mxu0 0
    %776 = vmatpush.bf16.msra.mxu0 %v43
    %777 = vmatpush.bf16.msra.mxu0 %v42
    %778 = vmatmul.bf16.gmra.mxu0 %v768
    %v779 = vpop.f32.mrf.mxu0
    %v780 = vadd.f32 0.0, %v779
    %v781 = vpop.f32.mrf.mxu0
    %782 = vdwg.mxu0
    %v783 = vadd.f32 %v764, %v780
    %v784 = vxor.u32 %v783, 2147483648
    %v785 = vmul.f32 %v784, 1.442695
    %v786 = vpow.pop %v785
    %v787 = vadd.f32 %v786, 1.0
    %v788 = vrcp.pop %v787
    %v789 = vmul.f32 %v787, %v788
    %v790 = vsub.f32 1.0, %v789
    %v791 = vmul.f32 %v788, %v790
    %v792 = vadd.f32 %v788, %v791
    %vm793 = vweird.f32 %v787
    %vm794 = vweird.f32 %v788
    %vm795 = vmor %vm793, %vm794
    %v796 = vsel %vm795, %v788, %v792
    %v797 = vand.u32 2147483647, %v787
    %vm798 = vcmp.eq.f32.partialorder %v797, 8.507059e+37
    %v799 = vand.u32 %v787, 2147483648
    %v800 = vor.u32 1.1754944e-38, %v799
    %v801 = vsel %vm798, %v800, %v796
    %v802 = vmul.f32 1.0, %v801
    %v803 = vtanh.pop %v783
    %v804 = vld [vmem:[#allocation3] sm:$0x3]
    %806 = vrot.lane.b32.xlu0 %v804, 32
    %v807 = vpop.permute.xlu0 %806
    %v809 = vmul.f32 %v802, %v807
    %811 = vrot.lane.b32.xlu0 %v803, 64
    %v812 = vpop.permute.xlu0 %811
    %v814 = vmul.f32 %v802, %v812
    %816 = vrot.lane.b32.xlu0 %v814, 32
    %v817 = vpop.permute.xlu0 %816
    %v819 = vadd.f32 %v809, %v817
    %v820 = vtanh.pop %v819
    %822 = vrot.lane.b32.xlu0 %v820, 64
    %v823 = vpop.permute.xlu0 %822
    %v825 = vmul.f32 %v802, %v823
    %827 = vrot.lane.b32.xlu0 %v819, 96
    %v828 = vpop.permute.xlu0 %827
    %830 = vst.msk [vmem:[#allocation3] sm:$0x3] %vm22, %v828
    %832 = vrot.lane.b32.xlu0 %v825, 32
    %v833 = vpop.permute.xlu0 %832
    %835 = vst.msk [vmem:[#allocation2] sm:$0x3] %vm22, %v833
    %vm836 = vcmp.gt.s32.totalorder %v26, 7
    %v837 = vsel %vm836, 1, 0
    %838 = vset.pattern.permute.xlu0 0
    %839 = vperm.xlu0 %838, %v837
    %v840 = vpop.permute.xlu0 %839
    %vm841 = vcmp.eq.s32.totalorder %v840, 1
    %v842 = vsel %vm841, %v825, 0.0
    %844 = vrot.lane.b32.xlu0 %v842, 32
    %v845 = vpop.permute.xlu0 %844
    %s847 = scalar_lea.vmem [#allocation5], 14
    %848 = vst.msk [vmem:[%s847] sm:$0x3] %vm22, %v845
    %vm849 = vcmp.eq.s32.totalorder %v26, 8
    %v850 = vld [vmem:[#allocation4] sm:$0x3]
    %v851 = vsel %vm849, 1, 0
    %852 = vset.pattern.permute.xlu0 0
    %853 = vperm.xlu0 %852, %v851
    %v854 = vpop.permute.xlu0 %853
    %vm855 = vcmp.eq.s32.totalorder %v854, 1
    %857 = vrot.lane.b32.xlu0 %v850, 96
    %v858 = vpop.permute.xlu0 %857
    %v860 = vsel %vm855, %v825, %v858
    %862 = vrot.lane.b32.xlu0 %v860, 32
    %v863 = vpop.permute.xlu0 %862
    %865 = vst.msk [vmem:[#allocation4] sm:$0x3] %vm22, %v863
    %v866 = vld [vmem:[#allocation5] sm:$0x3]
    %v867 = vld [vmem:[#allocation5 + $0x2] sm:$0x3]
    %v868 = vld [vmem:[#allocation5 + $0x4] sm:$0x3]
    %v869 = vld [vmem:[#allocation5 + $0x6] sm:$0x3]
    %v870 = vld [vmem:[#allocation5 + $0x8] sm:$0x3]
    %v871 = vld [vmem:[#allocation5 + $0xa] sm:$0x3]
    %v872 = vld [vmem:[#allocation5 + $0xc] sm:$0x3]
    %v873 = vld [vmem:[#allocation5 + $0xe] sm:$0x3]
    %v874 = vld [vmem:[#allocation4] sm:$0x3]
    %v875 = vld [vmem:[%s2] sm:$0x1]
    %v877 = vperm.slane %v875, 0
    %v879 = vmul.f32 %v874, %v877
    %v880 = vmul.f32 %v866, %v879
    %v881 = vmul.f32 %v867, %v879
    %v882 = vmul.f32 %v868, %v879
    %v883 = vmul.f32 %v869, %v879
    %v884 = vmul.f32 %v870, %v879
    %v885 = vmul.f32 %v871, %v879
    %v886 = vmul.f32 %v872, %v879
    %v887 = vmul.f32 %v873, %v879
    %v888 = vsel %vm22, %v880, 0.0
    %889 = vadd.xlane.f32.xlu0 %v888
    %v890 = vpop.xlane.xlu0 %889
    %v891 = vsel %vm22, %v881, 0.0
    %892 = vadd.xlane.f32.xlu0 %v891
    %v893 = vpop.xlane.xlu0 %892
    %v894 = vsel %vm22, %v882, 0.0
    %895 = vadd.xlane.f32.xlu0 %v894
    %v896 = vpop.xlane.xlu0 %895
    %v897 = vsel %vm22, %v883, 0.0
    %898 = vadd.xlane.f32.xlu0 %v897
    %v899 = vpop.xlane.xlu0 %898
    %v900 = vsel %vm22, %v884, 0.0
    %901 = vadd.xlane.f32.xlu0 %v900
    %v902 = vpop.xlane.xlu0 %901
    %v903 = vsel %vm22, %v885, 0.0
    %904 = vadd.xlane.f32.xlu0 %v903
    %v905 = vpop.xlane.xlu0 %904
    %v906 = vsel %vm22, %v886, 0.0
    %907 = vadd.xlane.f32.xlu0 %v906
    %v908 = vpop.xlane.xlu0 %907
    %v909 = vsel %vm22, %v887, 0.0
    %910 = vadd.xlane.f32.xlu0 %v909
    %v911 = vpop.xlane.xlu0 %910
    %v920 = vlaneseq
    %v921 = vand.u32 %v920, 127
    %v922 = vperm.slane %v890, %v921
    %v923 = vperm.slane %v893, %v921
    %v924 = vperm.slane %v896, %v921
    %v925 = vperm.slane %v899, %v921
    %v926 = vperm.slane %v902, %v921
    %v927 = vperm.slane %v905, %v921
    %v928 = vperm.slane %v908, %v921
    %v929 = vperm.slane %v911, %v921
    %vm930 = vcmask 1041409
    %v931 = vsel %vm930, %v923, %v922
    %vm932 = vcmask 1042434
    %v933 = vsel %vm932, %v924, %v931
    %vm934 = vcmask 1043459
    %v935 = vsel %vm934, %v925, %v933
    %vm936 = vcmask 1044484
    %v937 = vsel %vm936, %v926, %v935
    %vm938 = vcmask 1045509
    %v939 = vsel %vm938, %v927, %v937
    %vm940 = vcmask 1046534
    %v941 = vsel %vm940, %v928, %v939
    %vm942 = vcmask 1047559
    %v943 = vsel %vm942, %v929, %v941
    %945 = vxpose.xlu0.b32.start [1/16] %v943, 128
    %946 = vxpose.xlu0.b32.cont [2/16] 0.0, 128
    %947 = vxpose.xlu0.b32.cont [3/16] 0.0, 128
    %948 = vxpose.xlu0.b32.cont [4/16] 0.0, 128
    %949 = vxpose.xlu0.b32.cont [5/16] 0.0, 128
    %950 = vxpose.xlu0.b32.cont [6/16] 0.0, 128
    %951 = vxpose.xlu0.b32.cont [7/16] 0.0, 128
    %952 = vxpose.xlu0.b32.cont [8/16] 0.0, 128
    %953 = vxpose.xlu0.b32.cont [9/16] 0.0, 128
    %954 = vxpose.xlu0.b32.cont [10/16] 0.0, 128
    %955 = vxpose.xlu0.b32.cont [11/16] 0.0, 128
    %956 = vxpose.xlu0.b32.cont [12/16] 0.0, 128
    %957 = vxpose.xlu0.b32.cont [13/16] 0.0, 128
    %958 = vxpose.xlu0.b32.cont [14/16] 0.0, 128
    %959 = vxpose.xlu0.b32.cont [15/16] 0.0, 128
    %960 = vxpose.xlu0.b32.end [16/16] 0.0, 128
    %v961 = vpop.trf.xlu0
    %v962 = vpop.trf.xlu0
    %v963 = vpop.trf.xlu0
    %v964 = vpop.trf.xlu0
    %v965 = vpop.trf.xlu0
    %v966 = vpop.trf.xlu0
    %v967 = vpop.trf.xlu0
    %v968 = vpop.trf.xlu0
    %v969 = vpop.trf.xlu0
    %v970 = vpop.trf.xlu0
    %v971 = vpop.trf.xlu0
    %v972 = vpop.trf.xlu0
    %v973 = vpop.trf.xlu0
    %v974 = vpop.trf.xlu0
    %v975 = vpop.trf.xlu0
    %v976 = vpop.trf.xlu0
    %977 = vset.pattern.permute.xlu0 0
    %978 = vperm.xlu0 %977, %v26
    %v979 = vpop.permute.xlu0 %978
    %vm980 = vcmp.lt.s32.totalorder %v921, %v979
    %v981 = vsel %vm980, %v961, -1e+09
    %vm982 = vcmask 58368
    %v983 = vsel %vm982, %v981, -inf
    %984 = vmax.xlane.f32.xlu0 %v983
    %v985 = vpop.xlane.xlu0 %984
    %v986 = vsub.f32 %v981, %v985
    %v987 = vmul.f32 %v986, 1.442695
    %v988 = vpow.pop %v987
    %v989 = vsel %vm982, %v988, 0.0
    %990 = vadd.xlane.f32.xlu0 %v989
    %v991 = vpop.xlane.xlu0 %990
    %v992 = vrcp.pop %v991
    %v993 = vmul.f32 %v988, %v992
    %994 = vst.msk [vmem:[#allocation8] sm:$0x3] %vm982, %v993
    %995 = vxpose.xlu0.b32.start [1/16] %v993, 128
    %996 = vxpose.xlu0.b32.cont [2/16] 0.0, 128
    %997 = vxpose.xlu0.b32.cont [3/16] 0.0, 128
    %998 = vxpose.xlu0.b32.cont [4/16] 0.0, 128
    %999 = vxpose.xlu0.b32.cont [5/16] 0.0, 128
    %1000 = vxpose.xlu0.b32.cont [6/16] 0.0, 128
    %1001 = vxpose.xlu0.b32.cont [7/16] 0.0, 128
    %1002 = vxpose.xlu0.b32.cont [8/16] 0.0, 128
    %1003 = vxpose.xlu0.b32.cont [9/16] 0.0, 128
    %1004 = vxpose.xlu0.b32.cont [10/16] 0.0, 128
    %1005 = vxpose.xlu0.b32.cont [11/16] 0.0, 128
    %1006 = vxpose.xlu0.b32.cont [12/16] 0.0, 128
    %1007 = vxpose.xlu0.b32.cont [13/16] 0.0, 128
    %1008 = vxpose.xlu0.b32.cont [14/16] 0.0, 128
    %1009 = vxpose.xlu0.b32.cont [15/16] 0.0, 128
    %1010 = vxpose.xlu0.b32.end [16/16] 0.0, 128
    %v1011 = vpop.trf.xlu0
    %v1012 = vpop.trf.xlu0
    %v1013 = vpop.trf.xlu0
    %v1014 = vpop.trf.xlu0
    %v1015 = vpop.trf.xlu0
    %v1016 = vpop.trf.xlu0
    %v1017 = vpop.trf.xlu0
    %v1018 = vpop.trf.xlu0
    %v1019 = vpop.trf.xlu0
    %v1020 = vpop.trf.xlu0
    %v1021 = vpop.trf.xlu0
    %v1022 = vpop.trf.xlu0
    %v1023 = vpop.trf.xlu0
    %v1024 = vpop.trf.xlu0
    %v1025 = vpop.trf.xlu0
    %v1026 = vpop.trf.xlu0
    %v1027 = vperm.slane %v1011, 0
    %v1028 = vlaneseq
    %v1029 = vshrl.u32 %v1028, 7
    %1031 = vset.pattern.permute.xlu0 %v1029
    %1032 = vperm.xlu0 %1031, %v1027
    %v1033 = vpop.permute.xlu0 %1032
    %v1034 = vperm.slane %v1011, 1
    %v1035 = vlaneseq
    %v1036 = vshrl.u32 %v1035, 7
    %1038 = vset.pattern.permute.xlu0 %v1036
    %1039 = vperm.xlu0 %1038, %v1034
    %v1040 = vpop.permute.xlu0 %1039
    %v1041 = vperm.slane %v1011, 2
    %v1042 = vlaneseq
    %v1043 = vshrl.u32 %v1042, 7
    %1045 = vset.pattern.permute.xlu0 %v1043
    %1046 = vperm.xlu0 %1045, %v1041
    %v1047 = vpop.permute.xlu0 %1046
    %v1048 = vperm.slane %v1011, 3
    %v1049 = vlaneseq
    %v1050 = vshrl.u32 %v1049, 7
    %1052 = vset.pattern.permute.xlu0 %v1050
    %1053 = vperm.xlu0 %1052, %v1048
    %v1054 = vpop.permute.xlu0 %1053
    %v1055 = vperm.slane %v1011, 4
    %v1056 = vlaneseq
    %v1057 = vshrl.u32 %v1056, 7
    %1059 = vset.pattern.permute.xlu0 %v1057
    %1060 = vperm.xlu0 %1059, %v1055
    %v1061 = vpop.permute.xlu0 %1060
    %v1062 = vperm.slane %v1011, 5
    %v1063 = vlaneseq
    %v1064 = vshrl.u32 %v1063, 7
    %1066 = vset.pattern.permute.xlu0 %v1064
    %1067 = vperm.xlu0 %1066, %v1062
    %v1068 = vpop.permute.xlu0 %1067
    %v1069 = vperm.slane %v1011, 6
    %v1070 = vlaneseq
    %v1071 = vshrl.u32 %v1070, 7
    %1073 = vset.pattern.permute.xlu0 %v1071
    %1074 = vperm.xlu0 %1073, %v1069
    %v1075 = vpop.permute.xlu0 %1074
    %v1076 = vperm.slane %v1011, 7
    %v1077 = vlaneseq
    %v1078 = vshrl.u32 %v1077, 7
    %1080 = vset.pattern.permute.xlu0 %v1078
    %1081 = vperm.xlu0 %1080, %v1076
    %v1082 = vpop.permute.xlu0 %1081
    %v1083 = vmul.f32 %v866, %v1033
    %v1084 = vmul.f32 %v867, %v1040
    %v1085 = vmul.f32 %v868, %v1047
    %v1086 = vmul.f32 %v869, %v1054
    %v1087 = vmul.f32 %v870, %v1061
    %v1088 = vmul.f32 %v871, %v1068
    %v1089 = vmul.f32 %v872, %v1075
    %v1090 = vmul.f32 %v873, %v1082
    %v1091 = vsel %vm22, %v1083, 0.0
    %v1092 = vsel %vm22, %v1084, 0.0
    %v1093 = vadd.f32 %v1091, %v1092
    %v1094 = vsel %vm22, %v1085, 0.0
    %v1095 = vadd.f32 %v1093, %v1094
    %v1096 = vsel %vm22, %v1086, 0.0
    %v1097 = vadd.f32 %v1095, %v1096
    %v1098 = vsel %vm22, %v1087, 0.0
    %v1099 = vadd.f32 %v1097, %v1098
    %v1100 = vsel %vm22, %v1088, 0.0
    %v1101 = vadd.f32 %v1099, %v1100
    %v1102 = vsel %vm22, %v1089, 0.0
    %v1103 = vadd.f32 %v1101, %v1102
    %v1104 = vsel %vm22, %v1090, 0.0
    %v1105 = vadd.f32 %v1103, %v1104
    %1106 = vst.msk [vmem:[#allocation6] sm:$0x3] %vm22, %v1105
    // Predicated region
    $region18: #{lstm_forward.3} parent=1 // pred_check
      _
    $region19: #{lstm_forward.3} parent=1 // pred_check_branch
      %1108 = sbr.rel (0) target = $region21
    $region20: #{lstm_forward.3} parent=1 // pred_region
      %1110 = vsyncadd [#allocation7], 0
      %s1112 = sshll.u32 [#allocation6], 4
      %s1113 = int_to_ptr.vmem [resolvable:$true] %s1112
      %s1114 = sshll.u32 %s4, 4
      %s1115 = int_to_ptr.hbm [resolvable:$true] %s1114
      %1117 = dma.vmem_to_hbm [thread:$0]  %s1113, 32, %s1115, [#allocation7]
    $region21: #{lstm_forward.3} parent=1 // pred_fallthru
      _
    // Predicated region
    $region22: #{lstm_forward.3} parent=1 // pred_check
      _
    $region23: #{lstm_forward.3} parent=1 // pred_check_branch
      %1119 = sbr.rel (0) target = $region25
    $region24: #{lstm_forward.3} parent=1 // pred_region
      %1121 = vsyncadd [#allocation9], 0
      %s1123 = sshll.u32 [#allocation8], 4
      %s1124 = int_to_ptr.vmem [resolvable:$true] %s1123
      %s1125 = sshll.u32 %s5, 4
      %s1126 = int_to_ptr.hbm [resolvable:$true] %s1125
      %1128 = dma.vmem_to_hbm [thread:$0]  %s1124, 32, %s1126, [#allocation9]
    $region25: #{lstm_forward.3} parent=1 // pred_fallthru
      _
    // Predicated region
    $region26: #{lstm_forward.3} parent=1 // pred_check
      _
    $region27: #{lstm_forward.3} parent=1 // pred_check_branch
      %1130 = sbr.rel (0) target = $region29
    $region28: #{lstm_forward.3} parent=1 // pred_region
      %1132 = dma.done [#allocation7], 32
    $region29: #{lstm_forward.3} parent=1 // pred_fallthru
      _
    // Predicated region
    $region30: #{lstm_forward.3} parent=1 // pred_check
      _
    $region31: #{lstm_forward.3} parent=1 // pred_check_branch
      %1134 = sbr.rel (0) target = $region33
    $region32: #{lstm_forward.3} parent=1 // pred_region
      %1136 = dma.done [#allocation9], 32
    $region33: #{lstm_forward.3} parent=1 // pred_fallthru
      _
    %1137 = vsyncpa [#allocation7], 1
    %1138 = vsyncpa [#allocation9], 1

</llo_original>
